<compile_context>
chip_gen: v7x
topology: tpu7x:2x2x1
jax: 0.10.0
libtpu: 0.0.40
codegen_flags: <defaults>
</compile_context>

<pallas_src>
import jax
import jax.numpy as jnp
from jax.experimental import pallas as pl
from jax.experimental.pallas import tpu as pltpu

DIM_LATENT = 2
DIM_IN = 28 * 28            # 784
DIM_PAD = 896               # 7 * 128: lane-dense padding of the pixel axis
LAT_PAD = 128               # lane-dense slab holding [mu | sigma | z | zeros]
H1, H2 = 128, 64


def _vae_kernel(x_ref, eps_ref,
                w1_ref, b1_ref, w2_ref, b2_ref, w3_ref, b3_ref,
                w4_ref, b4_ref, w5_ref, b5_ref, w6_ref, b6_ref,
                recon_ref, lat_ref):
    f32 = jnp.float32
    x = x_ref[...]                                             # (TB, 896) bf16

    # ----- encoder: 896 (=784 zero-padded) -> 128 -> 64 -> 2*L -----
    h1 = jnp.dot(x, w1_ref[...], preferred_element_type=f32) + b1_ref[...]
    h1 = jnp.maximum(h1, 0.0).astype(jnp.bfloat16)
    h2 = jnp.dot(h1, w2_ref[...], preferred_element_type=f32) + b2_ref[...]
    h2 = jnp.maximum(h2, 0.0).astype(jnp.bfloat16)
    enc = jnp.dot(h2, w3_ref[...], preferred_element_type=f32) + b3_ref[...]
    # enc: (TB, 2*L); torch .view(-1, 2, L): [:,0,:] = first L cols, [:,1,:] = last L
    mu = enc[:, :DIM_LATENT]                                   # (TB, L)
    sigma = jnp.exp(enc[:, DIM_LATENT:])                       # (TB, L)  (EUP)

    # ----- reparameterization: z = mu + sigma * eps -----
    z = mu + sigma * eps_ref[...]                              # (TB, L) f32

    # ----- decoder: L -> 64 -> 128 -> 896 -----
    # K=2 contraction done on the VPU as an outer product (skip the MXU).
    w4 = w4_ref[...].astype(f32)                               # (L, 64)
    d1 = b4_ref[...]                                           # (1, 64)
    for l in range(DIM_LATENT):
        d1 = d1 + z[:, l:l + 1] * w4[l:l + 1, :]
    d1 = jnp.maximum(d1, 0.0).astype(jnp.bfloat16)
    d2 = jnp.dot(d1, w5_ref[...], preferred_element_type=f32) + b5_ref[...]
    d2 = jnp.maximum(d2, 0.0).astype(jnp.bfloat16)
    recon = jnp.dot(d2, w6_ref[...], preferred_element_type=f32) + b6_ref[...]

    recon_ref[...] = recon.astype(recon_ref.dtype)

    # Single lane-dense latent slab: [mu | sigma | z | zeros].
    tb = mu.shape[0]
    pad = jnp.zeros((tb, LAT_PAD - 3 * DIM_LATENT), f32)
    lat_ref[...] = jnp.concatenate([mu, sigma, z, pad], axis=-1)


def _round_up(n, m):
    return ((n + m - 1) // m) * m


def vae_forward(x, eps, params, *, batch_tile=512):
    """x: (B, 784) f32, eps: (B, L) f32 N(0,1) noise, params: dict of f32 arrays.

    Returns (reconstruction, mu, sigma, z) matching the PyTorch module's forward.
    batch_tile: rows per grid step (512 keeps double-buffered VMEM ~6.5 MiB).
    Small batches are rounded up to a multiple of 16 (bf16 sublane packing).
    """
    B = x.shape[0]
    tb = min(batch_tile, _round_up(B, 16))
    n_tiles = pl.cdiv(B, tb)
    Bp = n_tiles * tb

    bf16 = jnp.bfloat16
    # Zero-pad the batch to a multiple of the tile and the pixel axis to 896.
    # Cast x to bf16 in the wrapper: the kernel computed in bf16 anyway, so this
    # is numerically identical while halving the input HBM traffic.
    x_p = jnp.pad(x.astype(bf16), ((0, Bp - B), (0, DIM_PAD - DIM_IN)))
    eps_p = jnp.pad(eps, ((0, Bp - B), (0, 0)))

    w1 = jnp.pad(params["w1"], ((0, DIM_PAD - DIM_IN), (0, 0))).astype(bf16)
    w2 = params["w2"].astype(bf16)
    w3 = params["w3"].astype(bf16)
    w4 = params["w4"].astype(bf16)
    w5 = params["w5"].astype(bf16)
    w6 = jnp.pad(params["w6"], ((0, 0), (0, DIM_PAD - DIM_IN))).astype(bf16)
    b1, b2, b3 = params["b1"], params["b2"], params["b3"]
    b4, b5 = params["b4"], params["b5"]
    b6 = jnp.pad(params["b6"], ((0, 0), (0, DIM_PAD - DIM_IN)))

    weights = (w1, b1, w2, b2, w3, b3, w4, b4, w5, b5, w6, b6)

    def batch_spec(width):
        return pl.BlockSpec((tb, width), lambda i: (i, 0))

    def resident_spec(a):
        # Constant block index -> DMA'd once, stays VMEM-resident across steps.
        return pl.BlockSpec(a.shape, lambda i: (0, 0))

    in_specs = [batch_spec(DIM_PAD), batch_spec(DIM_LATENT)] + [
        resident_spec(a) for a in weights
    ]
    out_specs = (batch_spec(DIM_PAD), batch_spec(LAT_PAD))
    out_shape = (
        jax.ShapeDtypeStruct((Bp, DIM_PAD), jnp.float32),   # padded reconstruction
        jax.ShapeDtypeStruct((Bp, LAT_PAD), jnp.float32),   # [mu|sigma|z|0] slab
    )

    flops = 2 * Bp * (DIM_PAD * H1 + H1 * H2 + H2 * 2 * DIM_LATENT
                      + DIM_LATENT * H2 + H2 * H1 + H1 * DIM_PAD)
    bytes_accessed = (
        int(x_p.size) * x_p.dtype.itemsize + int(eps_p.size) * 4
        + sum(int(a.size) * a.dtype.itemsize for a in weights)
        + Bp * DIM_PAD * 4 + Bp * LAT_PAD * 4
    )

    recon_p, lat_p = pl.pallas_call(
        _vae_kernel,
        grid=(n_tiles,),
        in_specs=in_specs,
        out_specs=out_specs,
        out_shape=out_shape,
        compiler_params=pltpu.CompilerParams(
            dimension_semantics=("parallel",)),
        cost_estimate=pl.CostEstimate(
            flops=flops,
            transcendentals=Bp * DIM_LATENT,
            bytes_accessed=bytes_accessed),
    )(x_p, eps_p, *weights)

    recon = recon_p[:B, :DIM_IN]
    mu = lat_p[:B, 0:DIM_LATENT]
    sigma = lat_p[:B, DIM_LATENT:2 * DIM_LATENT]
    z = lat_p[:B, 2 * DIM_LATENT:3 * DIM_LATENT]
    return recon, mu, sigma, z


def init_params(key):
    """Deterministic parameter init (PyTorch-like uniform fan-in scaling)."""
    dims = [
        ("w1", "b1", DIM_IN, H1),
        ("w2", "b2", H1, H2),
        ("w3", "b3", H2, 2 * DIM_LATENT),
        ("w4", "b4", DIM_LATENT, H2),
        ("w5", "b5", H2, H1),
        ("w6", "b6", H1, DIM_IN),
    ]
    params = {}
    for (wn, bn, fan_in, fan_out) in dims:
        key, kw, kb = jax.random.split(key, 3)
        bound = 1.0 / jnp.sqrt(fan_in)
        # stored as (in, out) so kernel does x @ W + b  (== PyTorch x @ W.T + b)
        params[wn] = jax.random.uniform(
            kw, (fan_in, fan_out), jnp.float32, minval=-bound, maxval=bound)
        params[bn] = jax.random.uniform(
            kb, (1, fan_out), jnp.float32, minval=-bound, maxval=bound)
    return params


def _reference_forward(x, eps, p):
    """Pure-JAX f32 reference for sanity checking."""
    h1 = jnp.maximum(x @ p["w1"] + p["b1"], 0.0)
    h2 = jnp.maximum(h1 @ p["w2"] + p["b2"], 0.0)
    enc = h2 @ p["w3"] + p["b3"]
    mu = enc[:, :DIM_LATENT]
    sigma = jnp.exp(enc[:, DIM_LATENT:])
    z = mu + sigma * eps
    d1 = jnp.maximum(z @ p["w4"] + p["b4"], 0.0)
    d2 = jnp.maximum(d1 @ p["w5"] + p["b5"], 0.0)
    return d2 @ p["w6"] + p["b6"], mu, sigma, z


if __name__ == "__main__":
    key = jax.random.PRNGKey(0)
    key, kx, keps, kp = jax.random.split(key, 4)

    B = 8
    x = jax.random.uniform(kx, (B, DIM_IN), jnp.float32)          # fake MNIST batch
    eps = jax.random.normal(keps, (B, DIM_LATENT), jnp.float32)   # randn_like(mu)
    params = init_params(kp)

    fwd = jax.jit(vae_forward)
    recon, mu, sigma, z = jax.block_until_ready(fwd(x, eps, params))

    # sanity check against pure-JAX f32 reference (bf16 weights/activations
    # inside the kernel -> compare with bf16-level tolerances)
    ref_recon, ref_mu, ref_sigma, ref_z = _reference_forward(x, eps, params)
    assert recon.shape == (B, DIM_IN)
    assert mu.shape == (B, DIM_LATENT) and sigma.shape == (B, DIM_LATENT)
    assert z.shape == (B, DIM_LATENT)
    assert jnp.allclose(recon, ref_recon, atol=1e-1, rtol=1e-1)
    assert jnp.allclose(mu, ref_mu, atol=5e-2, rtol=5e-2)
    assert jnp.allclose(sigma, ref_sigma, atol=5e-2, rtol=5e-2)
    assert jnp.allclose(z, ref_z, atol=5e-2, rtol=5e-2)

    print("KERNEL_OK")
</pallas_src>

<mosaic_0001>
module attributes {stable_mosaic.version = 11 : i64} {
  func.func @_vae_kernel(%arg0: i32, %arg1: memref<16x896xbf16, #tpu.memory_space<vmem>>, %arg2: memref<16x2xf32, #tpu.memory_space<vmem>>, %arg3: memref<896x128xbf16, #tpu.memory_space<vmem>>, %arg4: memref<1x128xf32, #tpu.memory_space<vmem>>, %arg5: memref<128x64xbf16, #tpu.memory_space<vmem>>, %arg6: memref<1x64xf32, #tpu.memory_space<vmem>>, %arg7: memref<64x4xbf16, #tpu.memory_space<vmem>>, %arg8: memref<1x4xf32, #tpu.memory_space<vmem>>, %arg9: memref<2x64xbf16, #tpu.memory_space<vmem>>, %arg10: memref<1x64xf32, #tpu.memory_space<vmem>>, %arg11: memref<64x128xbf16, #tpu.memory_space<vmem>>, %arg12: memref<1x128xf32, #tpu.memory_space<vmem>>, %arg13: memref<128x896xbf16, #tpu.memory_space<vmem>>, %arg14: memref<1x896xf32, #tpu.memory_space<vmem>>, %arg15: memref<16x896xf32, #tpu.memory_space<vmem>>, %arg16: memref<16x128xf32, #tpu.memory_space<vmem>>) attributes {dimension_semantics = [#tpu.dimension_semantics<parallel>], iteration_bounds = array<i64: 1>, scalar_prefetch = 0 : i64, scratch_operands = 0 : i64, tpu.core_type = #tpu.core_type<tc>, window_params = [{transform_indices = @transform_0, window_bounds = array<i64: 16, 896>}, {transform_indices = @transform_1, window_bounds = array<i64: 16, 2>}, {pipeline_mode = #tpu.pipeline_mode<synchronous>, transform_indices = @transform_2, window_bounds = array<i64: 896, 128>}, {pipeline_mode = #tpu.pipeline_mode<synchronous>, transform_indices = @transform_3, window_bounds = array<i64: 1, 128>}, {pipeline_mode = #tpu.pipeline_mode<synchronous>, transform_indices = @transform_4, window_bounds = array<i64: 128, 64>}, {pipeline_mode = #tpu.pipeline_mode<synchronous>, transform_indices = @transform_5, window_bounds = array<i64: 1, 64>}, {pipeline_mode = #tpu.pipeline_mode<synchronous>, transform_indices = @transform_6, window_bounds = array<i64: 64, 4>}, {pipeline_mode = #tpu.pipeline_mode<synchronous>, transform_indices = @transform_7, window_bounds = array<i64: 1, 4>}, {pipeline_mode = #tpu.pipeline_mode<synchronous>, transform_indices = @transform_8, window_bounds = array<i64: 2, 64>}, {pipeline_mode = #tpu.pipeline_mode<synchronous>, transform_indices = @transform_9, window_bounds = array<i64: 1, 64>}, {pipeline_mode = #tpu.pipeline_mode<synchronous>, transform_indices = @transform_10, window_bounds = array<i64: 64, 128>}, {pipeline_mode = #tpu.pipeline_mode<synchronous>, transform_indices = @transform_11, window_bounds = array<i64: 1, 128>}, {pipeline_mode = #tpu.pipeline_mode<synchronous>, transform_indices = @transform_12, window_bounds = array<i64: 128, 896>}, {pipeline_mode = #tpu.pipeline_mode<synchronous>, transform_indices = @transform_13, window_bounds = array<i64: 1, 896>}, {transform_indices = @transform_14, window_bounds = array<i64: 16, 896>}, {transform_indices = @transform_15, window_bounds = array<i64: 16, 128>}]} {
    %c0 = arith.constant 0 : index
    %c0_0 = arith.constant 0 : index
    %0 = vector.load %arg1[%c0, %c0_0] : memref<16x896xbf16, #tpu.memory_space<vmem>>, vector<16x896xbf16>
    %c0_1 = arith.constant 0 : index
    %c0_2 = arith.constant 0 : index
    %1 = vector.load %arg3[%c0_1, %c0_2] : memref<896x128xbf16, #tpu.memory_space<vmem>>, vector<896x128xbf16>
    %cst = arith.constant dense<0.000000e+00> : vector<16x128xf32>
    %2 = tpu.matmul %0, %1, %cst {dimension_numbers = #tpu.dot_dimension_numbers<[1], [0], [0], [1], [0, 0, 1, 1], [], []>} : vector<16x896xbf16>, vector<896x128xbf16>, vector<16x128xf32> -> vector<16x128xf32>
    %c0_3 = arith.constant 0 : index
    %c0_4 = arith.constant 0 : index
    %3 = vector.load %arg4[%c0_3, %c0_4] : memref<1x128xf32, #tpu.memory_space<vmem>>, vector<1x128xf32>
    %4 = vector.broadcast %3 : vector<1x128xf32> to vector<16x128xf32>
    %5 = arith.addf %2, %4 : vector<16x128xf32>
    %cst_5 = arith.constant 0.000000e+00 : f32
    %6 = vector.broadcast %cst_5 : f32 to vector<16x128xf32>
    %7 = arith.maximumf %5, %6 : vector<16x128xf32>
    %8 = arith.truncf %7 : vector<16x128xf32> to vector<16x128xbf16>
    %c0_6 = arith.constant 0 : index
    %c0_7 = arith.constant 0 : index
    %9 = vector.load %arg5[%c0_6, %c0_7] : memref<128x64xbf16, #tpu.memory_space<vmem>>, vector<128x64xbf16>
    %cst_8 = arith.constant dense<0.000000e+00> : vector<16x64xf32>
    %10 = tpu.matmul %8, %9, %cst_8 {dimension_numbers = #tpu.dot_dimension_numbers<[1], [0], [0], [1], [0, 0, 1, 1], [], []>} : vector<16x128xbf16>, vector<128x64xbf16>, vector<16x64xf32> -> vector<16x64xf32>
    %c0_9 = arith.constant 0 : index
    %c0_10 = arith.constant 0 : index
    %11 = vector.load %arg6[%c0_9, %c0_10] : memref<1x64xf32, #tpu.memory_space<vmem>>, vector<1x64xf32>
    %12 = vector.broadcast %11 : vector<1x64xf32> to vector<16x64xf32>
    %13 = arith.addf %10, %12 : vector<16x64xf32>
    %cst_11 = arith.constant 0.000000e+00 : f32
    %14 = vector.broadcast %cst_11 : f32 to vector<16x64xf32>
    %15 = arith.maximumf %13, %14 : vector<16x64xf32>
    %16 = arith.truncf %15 : vector<16x64xf32> to vector<16x64xbf16>
    %c0_12 = arith.constant 0 : index
    %c0_13 = arith.constant 0 : index
    %17 = vector.load %arg7[%c0_12, %c0_13] : memref<64x4xbf16, #tpu.memory_space<vmem>>, vector<64x4xbf16>
    %cst_14 = arith.constant dense<0.000000e+00> : vector<16x4xf32>
    %18 = tpu.matmul %16, %17, %cst_14 {dimension_numbers = #tpu.dot_dimension_numbers<[1], [0], [0], [1], [0, 0, 1, 1], [], []>} : vector<16x64xbf16>, vector<64x4xbf16>, vector<16x4xf32> -> vector<16x4xf32>
    %c0_15 = arith.constant 0 : index
    %c0_16 = arith.constant 0 : index
    %19 = vector.load %arg8[%c0_15, %c0_16] : memref<1x4xf32, #tpu.memory_space<vmem>>, vector<1x4xf32>
    %20 = vector.broadcast %19 : vector<1x4xf32> to vector<16x4xf32>
    %21 = arith.addf %18, %20 : vector<16x4xf32>
    %22 = vector.extract_strided_slice %21 {offsets = [0, 0], sizes = [16, 2], strides = [1, 1]} : vector<16x4xf32> to vector<16x2xf32>
    %23 = vector.extract_strided_slice %21 {offsets = [0, 2], sizes = [16, 2], strides = [1, 1]} : vector<16x4xf32> to vector<16x2xf32>
    %24 = math.exp %23 : vector<16x2xf32>
    %c0_17 = arith.constant 0 : index
    %c0_18 = arith.constant 0 : index
    %25 = vector.load %arg2[%c0_17, %c0_18] : memref<16x2xf32, #tpu.memory_space<vmem>>, vector<16x2xf32>
    %26 = arith.mulf %24, %25 : vector<16x2xf32>
    %27 = arith.addf %22, %26 : vector<16x2xf32>
    %c0_19 = arith.constant 0 : index
    %c0_20 = arith.constant 0 : index
    %28 = vector.load %arg9[%c0_19, %c0_20] : memref<2x64xbf16, #tpu.memory_space<vmem>>, vector<2x64xbf16>
    %29 = arith.extf %28 : vector<2x64xbf16> to vector<2x64xf32>
    %c0_21 = arith.constant 0 : index
    %c0_22 = arith.constant 0 : index
    %30 = vector.load %arg10[%c0_21, %c0_22] : memref<1x64xf32, #tpu.memory_space<vmem>>, vector<1x64xf32>
    %31 = vector.extract_strided_slice %27 {offsets = [0, 0], sizes = [16, 1], strides = [1, 1]} : vector<16x2xf32> to vector<16x1xf32>
    %32 = vector.extract_strided_slice %29 {offsets = [0, 0], sizes = [1, 64], strides = [1, 1]} : vector<2x64xf32> to vector<1x64xf32>
    %33 = vector.broadcast %31 : vector<16x1xf32> to vector<16x64xf32>
    %34 = vector.broadcast %32 : vector<1x64xf32> to vector<16x64xf32>
    %35 = arith.mulf %33, %34 : vector<16x64xf32>
    %36 = vector.broadcast %30 : vector<1x64xf32> to vector<16x64xf32>
    %37 = arith.addf %36, %35 : vector<16x64xf32>
    %38 = vector.extract_strided_slice %27 {offsets = [0, 1], sizes = [16, 1], strides = [1, 1]} : vector<16x2xf32> to vector<16x1xf32>
    %39 = vector.extract_strided_slice %29 {offsets = [1, 0], sizes = [1, 64], strides = [1, 1]} : vector<2x64xf32> to vector<1x64xf32>
    %40 = vector.broadcast %38 : vector<16x1xf32> to vector<16x64xf32>
    %41 = vector.broadcast %39 : vector<1x64xf32> to vector<16x64xf32>
    %42 = arith.mulf %40, %41 : vector<16x64xf32>
    %43 = arith.addf %37, %42 : vector<16x64xf32>
    %cst_23 = arith.constant 0.000000e+00 : f32
    %44 = vector.broadcast %cst_23 : f32 to vector<16x64xf32>
    %45 = arith.maximumf %43, %44 : vector<16x64xf32>
    %46 = arith.truncf %45 : vector<16x64xf32> to vector<16x64xbf16>
    %c0_24 = arith.constant 0 : index
    %c0_25 = arith.constant 0 : index
    %47 = vector.load %arg11[%c0_24, %c0_25] : memref<64x128xbf16, #tpu.memory_space<vmem>>, vector<64x128xbf16>
    %cst_26 = arith.constant dense<0.000000e+00> : vector<16x128xf32>
    %48 = tpu.matmul %46, %47, %cst_26 {dimension_numbers = #tpu.dot_dimension_numbers<[1], [0], [0], [1], [0, 0, 1, 1], [], []>} : vector<16x64xbf16>, vector<64x128xbf16>, vector<16x128xf32> -> vector<16x128xf32>
    %c0_27 = arith.constant 0 : index
    %c0_28 = arith.constant 0 : index
    %49 = vector.load %arg12[%c0_27, %c0_28] : memref<1x128xf32, #tpu.memory_space<vmem>>, vector<1x128xf32>
    %50 = vector.broadcast %49 : vector<1x128xf32> to vector<16x128xf32>
    %51 = arith.addf %48, %50 : vector<16x128xf32>
    %cst_29 = arith.constant 0.000000e+00 : f32
    %52 = vector.broadcast %cst_29 : f32 to vector<16x128xf32>
    %53 = arith.maximumf %51, %52 : vector<16x128xf32>
    %54 = arith.truncf %53 : vector<16x128xf32> to vector<16x128xbf16>
    %c0_30 = arith.constant 0 : index
    %c0_31 = arith.constant 0 : index
    %55 = vector.load %arg13[%c0_30, %c0_31] : memref<128x896xbf16, #tpu.memory_space<vmem>>, vector<128x896xbf16>
    %cst_32 = arith.constant dense<0.000000e+00> : vector<16x896xf32>
    %56 = tpu.matmul %54, %55, %cst_32 {dimension_numbers = #tpu.dot_dimension_numbers<[1], [0], [0], [1], [0, 0, 1, 1], [], []>} : vector<16x128xbf16>, vector<128x896xbf16>, vector<16x896xf32> -> vector<16x896xf32>
    %c0_33 = arith.constant 0 : index
    %c0_34 = arith.constant 0 : index
    %57 = vector.load %arg14[%c0_33, %c0_34] : memref<1x896xf32, #tpu.memory_space<vmem>>, vector<1x896xf32>
    %58 = vector.broadcast %57 : vector<1x896xf32> to vector<16x896xf32>
    %59 = arith.addf %56, %58 : vector<16x896xf32>
    %c0_35 = arith.constant 0 : index
    %c0_36 = arith.constant 0 : index
    %60 = vector.load %arg15[%c0_35, %c0_36] : memref<16x896xf32, #tpu.memory_space<vmem>>, vector<16x896xf32>
    tpu.vector_store %arg15[%c0_35, %c0_36], %59 {strides = array<i32>} : memref<16x896xf32, #tpu.memory_space<vmem>>, vector<16x896xf32>,
    %cst_37 = arith.constant 0.000000e+00 : f32
    %61 = vector.broadcast %cst_37 : f32 to vector<16x122xf32>
    %62 = tpu.concatenate %22, %24, %27, %61 in 1 : vector<16x2xf32>, vector<16x2xf32>, vector<16x2xf32>, vector<16x122xf32> -> vector<16x128xf32>
    %c0_38 = arith.constant 0 : index
    %c0_39 = arith.constant 0 : index
    %63 = vector.load %arg16[%c0_38, %c0_39] : memref<16x128xf32, #tpu.memory_space<vmem>>, vector<16x128xf32>
    tpu.vector_store %arg16[%c0_38, %c0_39], %62 {strides = array<i32>} : memref<16x128xf32, #tpu.memory_space<vmem>>, vector<16x128xf32>,
    return
  }
  func.func @transform_0(%arg0: i32) -> (i32, i32) {
    %c0_i32 = arith.constant 0 : i32
    %c0_i32_0 = arith.constant 0 : i32
    return %arg0, %c0_i32 : i32, i32
  }
  func.func @transform_1(%arg0: i32) -> (i32, i32) {
    %c0_i32 = arith.constant 0 : i32
    %c0_i32_0 = arith.constant 0 : i32
    return %arg0, %c0_i32 : i32, i32
  }
  func.func @transform_2(%arg0: i32) -> (i32, i32) {
    %c0_i32 = arith.constant 0 : i32
    %c0_i32_0 = arith.constant 0 : i32
    %c0_i32_1 = arith.constant 0 : i32
    return %c0_i32, %c0_i32_0 : i32, i32
  }
  func.func @transform_3(%arg0: i32) -> (i32, i32) {
    %c0_i32 = arith.constant 0 : i32
    %c0_i32_0 = arith.constant 0 : i32
    %c0_i32_1 = arith.constant 0 : i32
    return %c0_i32, %c0_i32_0 : i32, i32
  }
  func.func @transform_4(%arg0: i32) -> (i32, i32) {
    %c0_i32 = arith.constant 0 : i32
    %c0_i32_0 = arith.constant 0 : i32
    %c0_i32_1 = arith.constant 0 : i32
    return %c0_i32, %c0_i32_0 : i32, i32
  }
  func.func @transform_5(%arg0: i32) -> (i32, i32) {
    %c0_i32 = arith.constant 0 : i32
    %c0_i32_0 = arith.constant 0 : i32
    %c0_i32_1 = arith.constant 0 : i32
    return %c0_i32, %c0_i32_0 : i32, i32
  }
  func.func @transform_6(%arg0: i32) -> (i32, i32) {
    %c0_i32 = arith.constant 0 : i32
    %c0_i32_0 = arith.constant 0 : i32
    %c0_i32_1 = arith.constant 0 : i32
    return %c0_i32, %c0_i32_0 : i32, i32
  }
  func.func @transform_7(%arg0: i32) -> (i32, i32) {
    %c0_i32 = arith.constant 0 : i32
    %c0_i32_0 = arith.constant 0 : i32
    %c0_i32_1 = arith.constant 0 : i32
    return %c0_i32, %c0_i32_0 : i32, i32
  }
  func.func @transform_8(%arg0: i32) -> (i32, i32) {
    %c0_i32 = arith.constant 0 : i32
    %c0_i32_0 = arith.constant 0 : i32
    %c0_i32_1 = arith.constant 0 : i32
    return %c0_i32, %c0_i32_0 : i32, i32
  }
  func.func @transform_9(%arg0: i32) -> (i32, i32) {
    %c0_i32 = arith.constant 0 : i32
    %c0_i32_0 = arith.constant 0 : i32
    %c0_i32_1 = arith.constant 0 : i32
    return %c0_i32, %c0_i32_0 : i32, i32
  }
  func.func @transform_10(%arg0: i32) -> (i32, i32) {
    %c0_i32 = arith.constant 0 : i32
    %c0_i32_0 = arith.constant 0 : i32
    %c0_i32_1 = arith.constant 0 : i32
    return %c0_i32, %c0_i32_0 : i32, i32
  }
  func.func @transform_11(%arg0: i32) -> (i32, i32) {
    %c0_i32 = arith.constant 0 : i32
    %c0_i32_0 = arith.constant 0 : i32
    %c0_i32_1 = arith.constant 0 : i32
    return %c0_i32, %c0_i32_0 : i32, i32
  }
  func.func @transform_12(%arg0: i32) -> (i32, i32) {
    %c0_i32 = arith.constant 0 : i32
    %c0_i32_0 = arith.constant 0 : i32
    %c0_i32_1 = arith.constant 0 : i32
    return %c0_i32, %c0_i32_0 : i32, i32
  }
  func.func @transform_13(%arg0: i32) -> (i32, i32) {
    %c0_i32 = arith.constant 0 : i32
    %c0_i32_0 = arith.constant 0 : i32
    %c0_i32_1 = arith.constant 0 : i32
    return %c0_i32, %c0_i32_0 : i32, i32
  }
  func.func @transform_14(%arg0: i32) -> (i32, i32) {
    %c0_i32 = arith.constant 0 : i32
    %c0_i32_0 = arith.constant 0 : i32
    return %arg0, %c0_i32 : i32, i32
  }
  func.func @transform_15(%arg0: i32) -> (i32, i32) {
    %c0_i32 = arith.constant 0 : i32
    %c0_i32_0 = arith.constant 0 : i32
    return %arg0, %c0_i32 : i32, i32
  }
}

</mosaic_0001>

<llo_original>
// kernel: vae_forward.1
$region0: #{vae_forward.1}
  #allocation0 [shape = 'u32[]', space=smem, size = 0x4, offset = 0x4, fixed_abs, tag = 'smem constant byte address 0x4 - core index']
  #allocation1 [shape = 'u32[144,128]{1,0:T(1,128)}', space=vmem, size = 0x12000, scoped, tag = 'internal scratch']
  %s0 = inlined_call_operand.vmem [shape: bf16[16,896], index: 0, kind: input, shape index: {}]
  %s1 = inlined_call_operand.vmem [shape: f32[16,2], index: 1, kind: input, shape index: {}]
  %s2 = inlined_call_operand.vmem [shape: bf16[896,128], index: 2, kind: input, shape index: {}]
  %s3 = inlined_call_operand.vmem [shape: f32[1,128], index: 3, kind: input, shape index: {}]
  %s4 = inlined_call_operand.vmem [shape: bf16[128,64], index: 4, kind: input, shape index: {}]
  %s5 = inlined_call_operand.vmem [shape: f32[1,64], index: 5, kind: input, shape index: {}]
  %s6 = inlined_call_operand.vmem [shape: bf16[64,4], index: 6, kind: input, shape index: {}]
  %s7 = inlined_call_operand.vmem [shape: f32[1,4], index: 7, kind: input, shape index: {}]
  %s8 = inlined_call_operand.vmem [shape: bf16[2,64], index: 8, kind: input, shape index: {}]
  %s9 = inlined_call_operand.vmem [shape: f32[1,64], index: 9, kind: input, shape index: {}]
  %s10 = inlined_call_operand.vmem [shape: bf16[64,128], index: 10, kind: input, shape index: {}]
  %s11 = inlined_call_operand.vmem [shape: f32[1,128], index: 11, kind: input, shape index: {}]
  %s12 = inlined_call_operand.vmem [shape: bf16[128,896], index: 12, kind: input, shape index: {}]
  %s13 = inlined_call_operand.vmem [shape: f32[1,896], index: 13, kind: input, shape index: {}]
  %s14 = inlined_call_operand.vmem [shape: f32[16,896], index: 14, kind: output, shape index: {0}]
  %s15 = inlined_call_operand.vmem [shape: f32[16,128], index: 15, kind: output, shape index: {1}]
  %16 = xla_tuple %s14, %s15
  %s17 = sld [smem:[#allocation0]]
  $region74: #{vae_forward.1} parent=0
    _
  %s19 = ssub.s32 1, %s17
  %s20 = scalar_select 0, %s19, %s17
  // Predicated region
  $region2: #{vae_forward.1} parent=0 // pred_check
    _
  $region3: #{vae_forward.1} parent=0 // pred_check_branch
    %22 = sbr.rel (0) target = $region5
  $region4: #{vae_forward.1} parent=0 // pred_region
    _
  $region5: #{vae_forward.1} parent=0 // pred_fallthru
    _
  // Predicated region
  $region6: #{vae_forward.1} parent=0 // pred_check
    _
  $region7: #{vae_forward.1} parent=0 // pred_check_branch
    %24 = sbr.rel (0) target = $region9
  $region8: #{vae_forward.1} parent=0 // pred_region
    _
  $region9: #{vae_forward.1} parent=0 // pred_fallthru
    _
  // Predicated region
  $region10: #{vae_forward.1} parent=0 // pred_check
    _
  $region11: #{vae_forward.1} parent=0 // pred_check_branch
    %26 = sbr.rel (0) target = $region13
  $region12: #{vae_forward.1} parent=0 // pred_region
    _
  $region13: #{vae_forward.1} parent=0 // pred_fallthru
    _
  // Predicated region
  $region14: #{vae_forward.1} parent=0 // pred_check
    _
  $region15: #{vae_forward.1} parent=0 // pred_check_branch
    %28 = sbr.rel (0) target = $region17
  $region16: #{vae_forward.1} parent=0 // pred_region
    _
  $region17: #{vae_forward.1} parent=0 // pred_fallthru
    _
  // Predicated region
  $region18: #{vae_forward.1} parent=0 // pred_check
    _
  $region19: #{vae_forward.1} parent=0 // pred_check_branch
    %30 = sbr.rel (0) target = $region21
  $region20: #{vae_forward.1} parent=0 // pred_region
    _
  $region21: #{vae_forward.1} parent=0 // pred_fallthru
    _
  // Predicated region
  $region22: #{vae_forward.1} parent=0 // pred_check
    _
  $region23: #{vae_forward.1} parent=0 // pred_check_branch
    %32 = sbr.rel (0) target = $region25
  $region24: #{vae_forward.1} parent=0 // pred_region
    _
  $region25: #{vae_forward.1} parent=0 // pred_fallthru
    _
  // Predicated region
  $region26: #{vae_forward.1} parent=0 // pred_check
    _
  $region27: #{vae_forward.1} parent=0 // pred_check_branch
    %34 = sbr.rel (0) target = $region29
  $region28: #{vae_forward.1} parent=0 // pred_region
    _
  $region29: #{vae_forward.1} parent=0 // pred_fallthru
    _
  // Predicated region
  $region30: #{vae_forward.1} parent=0 // pred_check
    _
  $region31: #{vae_forward.1} parent=0 // pred_check_branch
    %36 = sbr.rel (0) target = $region33
  $region32: #{vae_forward.1} parent=0 // pred_region
    _
  $region33: #{vae_forward.1} parent=0 // pred_fallthru
    _
  // Predicated region
  $region34: #{vae_forward.1} parent=0 // pred_check
    _
  $region35: #{vae_forward.1} parent=0 // pred_check_branch
    %38 = sbr.rel (0) target = $region37
  $region36: #{vae_forward.1} parent=0 // pred_region
    _
  $region37: #{vae_forward.1} parent=0 // pred_fallthru
    _
  // Predicated region
  $region38: #{vae_forward.1} parent=0 // pred_check
    _
  $region39: #{vae_forward.1} parent=0 // pred_check_branch
    %40 = sbr.rel (0) target = $region41
  $region40: #{vae_forward.1} parent=0 // pred_region
    _
  $region41: #{vae_forward.1} parent=0 // pred_fallthru
    _
  // Predicated region
  $region42: #{vae_forward.1} parent=0 // pred_check
    _
  $region43: #{vae_forward.1} parent=0 // pred_check_branch
    %42 = sbr.rel (0) target = $region45
  $region44: #{vae_forward.1} parent=0 // pred_region
    _
  $region45: #{vae_forward.1} parent=0 // pred_fallthru
    _
  // Predicated region
  $region46: #{vae_forward.1} parent=0 // pred_check
    _
  $region47: #{vae_forward.1} parent=0 // pred_check_branch
    %44 = sbr.rel (0) target = $region49
  $region48: #{vae_forward.1} parent=0 // pred_region
    _
  $region49: #{vae_forward.1} parent=0 // pred_fallthru
    _
  // Predicated region
  $region50: #{vae_forward.1} parent=0 // pred_check
    _
  $region51: #{vae_forward.1} parent=0 // pred_check_branch
    %46 = sbr.rel (0) target = $region53
  $region52: #{vae_forward.1} parent=0 // pred_region
    _
  $region53: #{vae_forward.1} parent=0 // pred_fallthru
    _
  // Predicated region
  $region54: #{vae_forward.1} parent=0 // pred_check
    _
  $region55: #{vae_forward.1} parent=0 // pred_check_branch
    %48 = sbr.rel (0) target = $region57
  $region56: #{vae_forward.1} parent=0 // pred_region
    _
  $region57: #{vae_forward.1} parent=0 // pred_fallthru
    _
  %v50 = vld [vmem:[%s0] sm:$0xff]
  %v51 = vld [vmem:[%s0 + $0x8] sm:$0xff]
  %v52 = vld [vmem:[%s0 + $0x10] sm:$0xff]
  %v53 = vld [vmem:[%s0 + $0x18] sm:$0xf]
  %v54 = vld [vmem:[%s0 + $0x1c] sm:$0xff]
  %v55 = vld [vmem:[%s0 + $0x24] sm:$0xff]
  %v56 = vld [vmem:[%s0 + $0x2c] sm:$0xff]
  %v57 = vld [vmem:[%s0 + $0x34] sm:$0xf]
  %v58 = vld [vmem:[%s2] sm:$0xf]
  %v59 = vld [vmem:[%s2 + $0x4] sm:$0xf]
  %v60 = vld [vmem:[%s2 + $0x8] sm:$0xf]
  %v61 = vld [vmem:[%s2 + $0xc] sm:$0xf]
  %v62 = vld [vmem:[%s2 + $0x10] sm:$0xf]
  %v63 = vld [vmem:[%s2 + $0x14] sm:$0xf]
  %v64 = vld [vmem:[%s2 + $0x18] sm:$0xf]
  %v65 = vld [vmem:[%s2 + $0x1c] sm:$0xf]
  %v66 = vld [vmem:[%s2 + $0x20] sm:$0xf]
  %v67 = vld [vmem:[%s2 + $0x24] sm:$0xf]
  %v68 = vld [vmem:[%s2 + $0x28] sm:$0xf]
  %v69 = vld [vmem:[%s2 + $0x2c] sm:$0xf]
  %v70 = vld [vmem:[%s2 + $0x30] sm:$0xf]
  %v71 = vld [vmem:[%s2 + $0x34] sm:$0xf]
  %v72 = vld [vmem:[%s2 + $0x38] sm:$0xf]
  %v73 = vld [vmem:[%s2 + $0x3c] sm:$0xf]
  %v74 = vld [vmem:[%s2 + $0x40] sm:$0xf]
  %v75 = vld [vmem:[%s2 + $0x44] sm:$0xf]
  %v76 = vld [vmem:[%s2 + $0x48] sm:$0xf]
  %v77 = vld [vmem:[%s2 + $0x4c] sm:$0xf]
  %v78 = vld [vmem:[%s2 + $0x50] sm:$0xf]
  %v79 = vld [vmem:[%s2 + $0x54] sm:$0xf]
  %v80 = vld [vmem:[%s2 + $0x58] sm:$0xf]
  %v81 = vld [vmem:[%s2 + $0x5c] sm:$0xf]
  %v82 = vld [vmem:[%s2 + $0x60] sm:$0xf]
  %v83 = vld [vmem:[%s2 + $0x64] sm:$0xf]
  %v84 = vld [vmem:[%s2 + $0x68] sm:$0xf]
  %v85 = vld [vmem:[%s2 + $0x6c] sm:$0xf]
  %v86 = vld [vmem:[%s2 + $0x70] sm:$0xf]
  %v87 = vld [vmem:[%s2 + $0x74] sm:$0xf]
  %v88 = vld [vmem:[%s2 + $0x78] sm:$0xf]
  %v89 = vld [vmem:[%s2 + $0x7c] sm:$0xf]
  %v90 = vld [vmem:[%s2 + $0x80] sm:$0xf]
  %v91 = vld [vmem:[%s2 + $0x84] sm:$0xf]
  %v92 = vld [vmem:[%s2 + $0x88] sm:$0xf]
  %v93 = vld [vmem:[%s2 + $0x8c] sm:$0xf]
  %v94 = vld [vmem:[%s2 + $0x90] sm:$0xf]
  %v95 = vld [vmem:[%s2 + $0x94] sm:$0xf]
  %v96 = vld [vmem:[%s2 + $0x98] sm:$0xf]
  %v97 = vld [vmem:[%s2 + $0x9c] sm:$0xf]
  %v98 = vld [vmem:[%s2 + $0xa0] sm:$0xf]
  %v99 = vld [vmem:[%s2 + $0xa4] sm:$0xf]
  %v100 = vld [vmem:[%s2 + $0xa8] sm:$0xf]
  %v101 = vld [vmem:[%s2 + $0xac] sm:$0xf]
  %v102 = vld [vmem:[%s2 + $0xb0] sm:$0xf]
  %v103 = vld [vmem:[%s2 + $0xb4] sm:$0xf]
  %v104 = vld [vmem:[%s2 + $0xb8] sm:$0xf]
  %v105 = vld [vmem:[%s2 + $0xbc] sm:$0xf]
  %v106 = vld [vmem:[%s2 + $0xc0] sm:$0xf]
  %v107 = vld [vmem:[%s2 + $0xc4] sm:$0xf]
  %v108 = vld [vmem:[%s2 + $0xc8] sm:$0xf]
  %v109 = vld [vmem:[%s2 + $0xcc] sm:$0xf]
  %v110 = vld [vmem:[%s2 + $0xd0] sm:$0xf]
  %v111 = vld [vmem:[%s2 + $0xd4] sm:$0xf]
  %v112 = vld [vmem:[%s2 + $0xd8] sm:$0xf]
  %v113 = vld [vmem:[%s2 + $0xdc] sm:$0xf]
  %v114 = vld [vmem:[%s2 + $0xe0] sm:$0xf]
  %v115 = vld [vmem:[%s2 + $0xe4] sm:$0xf]
  %v116 = vld [vmem:[%s2 + $0xe8] sm:$0xf]
  %v117 = vld [vmem:[%s2 + $0xec] sm:$0xf]
  %v118 = vld [vmem:[%s2 + $0xf0] sm:$0xf]
  %v119 = vld [vmem:[%s2 + $0xf4] sm:$0xf]
  %v120 = vld [vmem:[%s2 + $0xf8] sm:$0xf]
  %v121 = vld [vmem:[%s2 + $0xfc] sm:$0xf]
  %v122 = vld [vmem:[%s2 + $0x100] sm:$0xf]
  %v123 = vld [vmem:[%s2 + $0x104] sm:$0xf]
  %v124 = vld [vmem:[%s2 + $0x108] sm:$0xf]
  %v125 = vld [vmem:[%s2 + $0x10c] sm:$0xf]
  %v126 = vld [vmem:[%s2 + $0x110] sm:$0xf]
  %v127 = vld [vmem:[%s2 + $0x114] sm:$0xf]
  %v128 = vld [vmem:[%s2 + $0x118] sm:$0xf]
  %v129 = vld [vmem:[%s2 + $0x11c] sm:$0xf]
  %v130 = vld [vmem:[%s2 + $0x120] sm:$0xf]
  %v131 = vld [vmem:[%s2 + $0x124] sm:$0xf]
  %v132 = vld [vmem:[%s2 + $0x128] sm:$0xf]
  %v133 = vld [vmem:[%s2 + $0x12c] sm:$0xf]
  %v134 = vld [vmem:[%s2 + $0x130] sm:$0xf]
  %v135 = vld [vmem:[%s2 + $0x134] sm:$0xf]
  %v136 = vld [vmem:[%s2 + $0x138] sm:$0xf]
  %v137 = vld [vmem:[%s2 + $0x13c] sm:$0xf]
  %v138 = vld [vmem:[%s2 + $0x140] sm:$0xf]
  %v139 = vld [vmem:[%s2 + $0x144] sm:$0xf]
  %v140 = vld [vmem:[%s2 + $0x148] sm:$0xf]
  %v141 = vld [vmem:[%s2 + $0x14c] sm:$0xf]
  %v142 = vld [vmem:[%s2 + $0x150] sm:$0xf]
  %v143 = vld [vmem:[%s2 + $0x154] sm:$0xf]
  %v144 = vld [vmem:[%s2 + $0x158] sm:$0xf]
  %v145 = vld [vmem:[%s2 + $0x15c] sm:$0xf]
  %v146 = vld [vmem:[%s2 + $0x160] sm:$0xf]
  %v147 = vld [vmem:[%s2 + $0x164] sm:$0xf]
  %v148 = vld [vmem:[%s2 + $0x168] sm:$0xf]
  %v149 = vld [vmem:[%s2 + $0x16c] sm:$0xf]
  %v150 = vld [vmem:[%s2 + $0x170] sm:$0xf]
  %v151 = vld [vmem:[%s2 + $0x174] sm:$0xf]
  %v152 = vld [vmem:[%s2 + $0x178] sm:$0xf]
  %v153 = vld [vmem:[%s2 + $0x17c] sm:$0xf]
  %v154 = vld [vmem:[%s2 + $0x180] sm:$0xf]
  %v155 = vld [vmem:[%s2 + $0x184] sm:$0xf]
  %v156 = vld [vmem:[%s2 + $0x188] sm:$0xf]
  %v157 = vld [vmem:[%s2 + $0x18c] sm:$0xf]
  %v158 = vld [vmem:[%s2 + $0x190] sm:$0xf]
  %v159 = vld [vmem:[%s2 + $0x194] sm:$0xf]
  %v160 = vld [vmem:[%s2 + $0x198] sm:$0xf]
  %v161 = vld [vmem:[%s2 + $0x19c] sm:$0xf]
  %v162 = vld [vmem:[%s2 + $0x1a0] sm:$0xf]
  %v163 = vld [vmem:[%s2 + $0x1a4] sm:$0xf]
  %v164 = vld [vmem:[%s2 + $0x1a8] sm:$0xf]
  %v165 = vld [vmem:[%s2 + $0x1ac] sm:$0xf]
  %v166 = vld [vmem:[%s2 + $0x1b0] sm:$0xf]
  %v167 = vld [vmem:[%s2 + $0x1b4] sm:$0xf]
  %v168 = vld [vmem:[%s2 + $0x1b8] sm:$0xf]
  %v169 = vld [vmem:[%s2 + $0x1bc] sm:$0xf]
  %v170 = vld [vmem:[%s3] sm:$0x1]
  %v172 = vlaneseq
  %v173 = vshrl.u32 %v172, 7
  %v174 = vsub.s32 0, %v173
  %v175 = vrot.slane %v170, %v174
  %v185 = vunpack.c.l.b16 %v50
  %v186 = vunpack.c.h.b16 %v50
  %v187 = vunpack.c.l.b16 %v51
  %v188 = vunpack.c.h.b16 %v51
  %v189 = vunpack.c.l.b16 %v52
  %v190 = vunpack.c.h.b16 %v52
  %v191 = vunpack.c.l.b16 %v53
  %v192 = vunpack.c.l.b16 %v54
  %v193 = vunpack.c.h.b16 %v54
  %v194 = vunpack.c.l.b16 %v55
  %v195 = vunpack.c.h.b16 %v55
  %v196 = vunpack.c.l.b16 %v56
  %v197 = vunpack.c.h.b16 %v56
  %v198 = vunpack.c.l.b16 %v57
  %v199 = vpack.c.b16 %v192, %v185
  %v200 = vpack.c.b16 %v193, %v186
  %v201 = vpack.c.b16 %v194, %v187
  %v202 = vpack.c.b16 %v195, %v188
  %v203 = vpack.c.b16 %v196, %v189
  %v204 = vpack.c.b16 %v197, %v190
  %v205 = vpack.c.b16 %v198, %v191
  %v325 = vunpack.c.l.b16 %v58
  %v326 = vunpack.c.l.b16 %v59
  %v327 = vunpack.c.l.b16 %v60
  %v328 = vunpack.c.l.b16 %v61
  %v329 = vunpack.c.l.b16 %v62
  %v330 = vunpack.c.l.b16 %v63
  %v331 = vunpack.c.l.b16 %v64
  %v332 = vunpack.c.l.b16 %v65
  %v333 = vunpack.c.l.b16 %v66
  %v334 = vunpack.c.l.b16 %v67
  %v335 = vunpack.c.l.b16 %v68
  %v336 = vunpack.c.l.b16 %v69
  %v337 = vunpack.c.l.b16 %v70
  %v338 = vunpack.c.l.b16 %v71
  %v339 = vunpack.c.l.b16 %v72
  %v340 = vunpack.c.l.b16 %v73
  %v341 = vunpack.c.l.b16 %v74
  %v342 = vunpack.c.l.b16 %v75
  %v343 = vunpack.c.l.b16 %v76
  %v344 = vunpack.c.l.b16 %v77
  %v345 = vunpack.c.l.b16 %v78
  %v346 = vunpack.c.l.b16 %v79
  %v347 = vunpack.c.l.b16 %v80
  %v348 = vunpack.c.l.b16 %v81
  %v349 = vunpack.c.l.b16 %v82
  %v350 = vunpack.c.l.b16 %v83
  %v351 = vunpack.c.l.b16 %v84
  %v352 = vunpack.c.l.b16 %v85
  %v353 = vunpack.c.l.b16 %v86
  %v354 = vunpack.c.l.b16 %v87
  %v355 = vunpack.c.l.b16 %v88
  %v356 = vunpack.c.l.b16 %v89
  %v357 = vunpack.c.l.b16 %v90
  %v358 = vunpack.c.l.b16 %v91
  %v359 = vunpack.c.l.b16 %v92
  %v360 = vunpack.c.l.b16 %v93
  %v361 = vunpack.c.l.b16 %v94
  %v362 = vunpack.c.l.b16 %v95
  %v363 = vunpack.c.l.b16 %v96
  %v364 = vunpack.c.l.b16 %v97
  %v365 = vunpack.c.l.b16 %v98
  %v366 = vunpack.c.l.b16 %v99
  %v367 = vunpack.c.l.b16 %v100
  %v368 = vunpack.c.l.b16 %v101
  %v369 = vunpack.c.l.b16 %v102
  %v370 = vunpack.c.l.b16 %v103
  %v371 = vunpack.c.l.b16 %v104
  %v372 = vunpack.c.l.b16 %v105
  %v373 = vunpack.c.l.b16 %v106
  %v374 = vunpack.c.l.b16 %v107
  %v375 = vunpack.c.l.b16 %v108
  %v376 = vunpack.c.l.b16 %v109
  %v377 = vunpack.c.l.b16 %v110
  %v378 = vunpack.c.l.b16 %v111
  %v379 = vunpack.c.l.b16 %v112
  %v380 = vunpack.c.l.b16 %v113
  %v381 = vunpack.c.l.b16 %v114
  %v382 = vunpack.c.l.b16 %v115
  %v383 = vunpack.c.l.b16 %v116
  %v384 = vunpack.c.l.b16 %v117
  %v385 = vunpack.c.l.b16 %v118
  %v386 = vunpack.c.l.b16 %v119
  %v387 = vunpack.c.l.b16 %v120
  %v388 = vunpack.c.l.b16 %v121
  %v389 = vunpack.c.l.b16 %v122
  %v390 = vunpack.c.l.b16 %v123
  %v391 = vunpack.c.l.b16 %v124
  %v392 = vunpack.c.l.b16 %v125
  %v393 = vunpack.c.l.b16 %v126
  %v394 = vunpack.c.l.b16 %v127
  %v395 = vunpack.c.l.b16 %v128
  %v396 = vunpack.c.l.b16 %v129
  %v397 = vunpack.c.l.b16 %v130
  %v398 = vunpack.c.l.b16 %v131
  %v399 = vunpack.c.l.b16 %v132
  %v400 = vunpack.c.l.b16 %v133
  %v401 = vunpack.c.l.b16 %v134
  %v402 = vunpack.c.l.b16 %v135
  %v403 = vunpack.c.l.b16 %v136
  %v404 = vunpack.c.l.b16 %v137
  %v405 = vunpack.c.l.b16 %v138
  %v406 = vunpack.c.l.b16 %v139
  %v407 = vunpack.c.l.b16 %v140
  %v408 = vunpack.c.l.b16 %v141
  %v409 = vunpack.c.l.b16 %v142
  %v410 = vunpack.c.l.b16 %v143
  %v411 = vunpack.c.l.b16 %v144
  %v412 = vunpack.c.l.b16 %v145
  %v413 = vunpack.c.l.b16 %v146
  %v414 = vunpack.c.l.b16 %v147
  %v415 = vunpack.c.l.b16 %v148
  %v416 = vunpack.c.l.b16 %v149
  %v417 = vunpack.c.l.b16 %v150
  %v418 = vunpack.c.l.b16 %v151
  %v419 = vunpack.c.l.b16 %v152
  %v420 = vunpack.c.l.b16 %v153
  %v421 = vunpack.c.l.b16 %v154
  %v422 = vunpack.c.l.b16 %v155
  %v423 = vunpack.c.l.b16 %v156
  %v424 = vunpack.c.l.b16 %v157
  %v425 = vunpack.c.l.b16 %v158
  %v426 = vunpack.c.l.b16 %v159
  %v427 = vunpack.c.l.b16 %v160
  %v428 = vunpack.c.l.b16 %v161
  %v429 = vunpack.c.l.b16 %v162
  %v430 = vunpack.c.l.b16 %v163
  %v431 = vunpack.c.l.b16 %v164
  %v432 = vunpack.c.l.b16 %v165
  %v433 = vunpack.c.l.b16 %v166
  %v434 = vunpack.c.l.b16 %v167
  %v435 = vunpack.c.l.b16 %v168
  %v436 = vunpack.c.l.b16 %v169
  %v437 = vpack.c.b16 %v326, %v325
  %v438 = vpack.c.b16 %v328, %v327
  %v439 = vpack.c.b16 %v330, %v329
  %v440 = vpack.c.b16 %v332, %v331
  %v441 = vpack.c.b16 %v334, %v333
  %v442 = vpack.c.b16 %v336, %v335
  %v443 = vpack.c.b16 %v338, %v337
  %v444 = vpack.c.b16 %v340, %v339
  %v445 = vpack.c.b16 %v342, %v341
  %v446 = vpack.c.b16 %v344, %v343
  %v447 = vpack.c.b16 %v346, %v345
  %v448 = vpack.c.b16 %v348, %v347
  %v449 = vpack.c.b16 %v350, %v349
  %v450 = vpack.c.b16 %v352, %v351
  %v451 = vpack.c.b16 %v354, %v353
  %v452 = vpack.c.b16 %v356, %v355
  %v453 = vpack.c.b16 %v358, %v357
  %v454 = vpack.c.b16 %v360, %v359
  %v455 = vpack.c.b16 %v362, %v361
  %v456 = vpack.c.b16 %v364, %v363
  %v457 = vpack.c.b16 %v366, %v365
  %v458 = vpack.c.b16 %v368, %v367
  %v459 = vpack.c.b16 %v370, %v369
  %v460 = vpack.c.b16 %v372, %v371
  %v461 = vpack.c.b16 %v374, %v373
  %v462 = vpack.c.b16 %v376, %v375
  %v463 = vpack.c.b16 %v378, %v377
  %v464 = vpack.c.b16 %v380, %v379
  %v465 = vpack.c.b16 %v382, %v381
  %v466 = vpack.c.b16 %v384, %v383
  %v467 = vpack.c.b16 %v386, %v385
  %v468 = vpack.c.b16 %v388, %v387
  %v469 = vpack.c.b16 %v390, %v389
  %v470 = vpack.c.b16 %v392, %v391
  %v471 = vpack.c.b16 %v394, %v393
  %v472 = vpack.c.b16 %v396, %v395
  %v473 = vpack.c.b16 %v398, %v397
  %v474 = vpack.c.b16 %v400, %v399
  %v475 = vpack.c.b16 %v402, %v401
  %v476 = vpack.c.b16 %v404, %v403
  %v477 = vpack.c.b16 %v406, %v405
  %v478 = vpack.c.b16 %v408, %v407
  %v479 = vpack.c.b16 %v410, %v409
  %v480 = vpack.c.b16 %v412, %v411
  %v481 = vpack.c.b16 %v414, %v413
  %v482 = vpack.c.b16 %v416, %v415
  %v483 = vpack.c.b16 %v418, %v417
  %v484 = vpack.c.b16 %v420, %v419
  %v485 = vpack.c.b16 %v422, %v421
  %v486 = vpack.c.b16 %v424, %v423
  %v487 = vpack.c.b16 %v426, %v425
  %v488 = vpack.c.b16 %v428, %v427
  %v489 = vpack.c.b16 %v430, %v429
  %v490 = vpack.c.b16 %v432, %v431
  %v491 = vpack.c.b16 %v434, %v433
  %v492 = vpack.c.b16 %v436, %v435
  %549 = vmatprep.subr.bf16.mxu0 0
  %550 = vmatpush1.bf16.msra.mxu0 %v437
  %551 = vmatprep.subr.bf16.mxu0 0
  %552 = vmatpush1.bf16.msra.mxu0 %v438
  %553 = vmatprep.subr.bf16.mxu0 0
  %554 = vmatpush1.bf16.msra.mxu0 %v439
  %555 = vmatprep.subr.bf16.mxu0 0
  %556 = vmatpush1.bf16.msra.mxu0 %v440
  %557 = vmatprep.subr.bf16.mxu0 0
  %558 = vmatpush1.bf16.msra.mxu0 %v441
  %559 = vmatprep.subr.bf16.mxu0 0
  %560 = vmatpush1.bf16.msra.mxu0 %v442
  %561 = vmatprep.subr.bf16.mxu0 0
  %562 = vmatpush1.bf16.msra.mxu0 %v443
  %563 = vmatprep.subr.bf16.mxu0 0
  %564 = vmatpush1.bf16.msra.mxu0 %v444
  %565 = vmatprep.subr.bf16.mxu0 0
  %566 = vmatpush1.bf16.msra.mxu0 %v445
  %567 = vmatprep.subr.bf16.mxu0 0
  %568 = vmatpush1.bf16.msra.mxu0 %v446
  %569 = vmatprep.subr.bf16.mxu0 0
  %570 = vmatpush1.bf16.msra.mxu0 %v447
  %571 = vmatprep.subr.bf16.mxu0 0
  %572 = vmatpush1.bf16.msra.mxu0 %v448
  %573 = vmatprep.subr.bf16.mxu0 0
  %574 = vmatpush1.bf16.msra.mxu0 %v449
  %575 = vmatprep.subr.bf16.mxu0 0
  %576 = vmatpush1.bf16.msra.mxu0 %v450
  %577 = vmatprep.subr.bf16.mxu0 0
  %578 = vmatpush1.bf16.msra.mxu0 %v451
  %579 = vmatprep.subr.bf16.mxu0 0
  %580 = vmatpush1.bf16.msra.mxu0 %v452
  %581 = vmatprep.mubr.bf16.mxu0 %v200
  %582 = vmatmul.mubr.bf16.gmra.mrb[0].mxu0 %v199
  %v583 = vpop.f32.mrb[0].mxu0
  %v584 = vadd.f32 %v175, %v583
  %v585 = vpop.f32.mrb[0].mxu0
  %v586 = vpop.f32.mrb[0].mxu0
  %v587 = vadd.f32 %v175, %v586
  %v588 = vpop.f32.mrb[0].mxu0
  %589 = vdwg.mxu0
  %590 = vmatprep.subr.bf16.mxu0 0
  %591 = vmatpush1.bf16.msra.mxu0 %v453
  %592 = vmatprep.subr.bf16.mxu0 0
  %593 = vmatpush1.bf16.msra.mxu0 %v454
  %594 = vmatprep.subr.bf16.mxu0 0
  %595 = vmatpush1.bf16.msra.mxu0 %v455
  %596 = vmatprep.subr.bf16.mxu0 0
  %597 = vmatpush1.bf16.msra.mxu0 %v456
  %598 = vmatprep.subr.bf16.mxu0 0
  %599 = vmatpush1.bf16.msra.mxu0 %v457
  %600 = vmatprep.subr.bf16.mxu0 0
  %601 = vmatpush1.bf16.msra.mxu0 %v458
  %602 = vmatprep.subr.bf16.mxu0 0
  %603 = vmatpush1.bf16.msra.mxu0 %v459
  %604 = vmatprep.subr.bf16.mxu0 0
  %605 = vmatpush1.bf16.msra.mxu0 %v460
  %606 = vmatprep.subr.bf16.mxu0 0
  %607 = vmatpush1.bf16.msra.mxu0 %v461
  %608 = vmatprep.subr.bf16.mxu0 0
  %609 = vmatpush1.bf16.msra.mxu0 %v462
  %610 = vmatprep.subr.bf16.mxu0 0
  %611 = vmatpush1.bf16.msra.mxu0 %v463
  %612 = vmatprep.subr.bf16.mxu0 0
  %613 = vmatpush1.bf16.msra.mxu0 %v464
  %614 = vmatprep.subr.bf16.mxu0 0
  %615 = vmatpush1.bf16.msra.mxu0 %v465
  %616 = vmatprep.subr.bf16.mxu0 0
  %617 = vmatpush1.bf16.msra.mxu0 %v466
  %618 = vmatprep.subr.bf16.mxu0 0
  %619 = vmatpush1.bf16.msra.mxu0 %v467
  %620 = vmatprep.subr.bf16.mxu0 0
  %621 = vmatpush1.bf16.msra.mxu0 %v468
  %622 = vmatprep.mubr.bf16.mxu0 %v202
  %623 = vmatmul.mubr.bf16.gmra.mrb[0].mxu0 %v201
  %v624 = vpop.f32.mrb[0].mxu0
  %v625 = vadd.f32 %v584, %v624
  %v626 = vpop.f32.mrb[0].mxu0
  %v627 = vpop.f32.mrb[0].mxu0
  %v628 = vadd.f32 %v587, %v627
  %v629 = vpop.f32.mrb[0].mxu0
  %630 = vdwg.mxu0
  %631 = vmatprep.subr.bf16.mxu0 0
  %632 = vmatpush1.bf16.msra.mxu0 %v469
  %633 = vmatprep.subr.bf16.mxu0 0
  %634 = vmatpush1.bf16.msra.mxu0 %v470
  %635 = vmatprep.subr.bf16.mxu0 0
  %636 = vmatpush1.bf16.msra.mxu0 %v471
  %637 = vmatprep.subr.bf16.mxu0 0
  %638 = vmatpush1.bf16.msra.mxu0 %v472
  %639 = vmatprep.subr.bf16.mxu0 0
  %640 = vmatpush1.bf16.msra.mxu0 %v473
  %641 = vmatprep.subr.bf16.mxu0 0
  %642 = vmatpush1.bf16.msra.mxu0 %v474
  %643 = vmatprep.subr.bf16.mxu0 0
  %644 = vmatpush1.bf16.msra.mxu0 %v475
  %645 = vmatprep.subr.bf16.mxu0 0
  %646 = vmatpush1.bf16.msra.mxu0 %v476
  %647 = vmatprep.subr.bf16.mxu0 0
  %648 = vmatpush1.bf16.msra.mxu0 %v477
  %649 = vmatprep.subr.bf16.mxu0 0
  %650 = vmatpush1.bf16.msra.mxu0 %v478
  %651 = vmatprep.subr.bf16.mxu0 0
  %652 = vmatpush1.bf16.msra.mxu0 %v479
  %653 = vmatprep.subr.bf16.mxu0 0
  %654 = vmatpush1.bf16.msra.mxu0 %v480
  %655 = vmatprep.subr.bf16.mxu0 0
  %656 = vmatpush1.bf16.msra.mxu0 %v481
  %657 = vmatprep.subr.bf16.mxu0 0
  %658 = vmatpush1.bf16.msra.mxu0 %v482
  %659 = vmatprep.subr.bf16.mxu0 0
  %660 = vmatpush1.bf16.msra.mxu0 %v483
  %661 = vmatprep.subr.bf16.mxu0 0
  %662 = vmatpush1.bf16.msra.mxu0 %v484
  %663 = vmatprep.mubr.bf16.mxu0 %v204
  %664 = vmatmul.mubr.bf16.gmra.mrb[0].mxu0 %v203
  %v665 = vpop.f32.mrb[0].mxu0
  %v666 = vadd.f32 %v625, %v665
  %v667 = vpop.f32.mrb[0].mxu0
  %v668 = vpop.f32.mrb[0].mxu0
  %v669 = vadd.f32 %v628, %v668
  %v670 = vpop.f32.mrb[0].mxu0
  %671 = vdwg.mxu0
  %672 = vmatprep.subr.bf16.mxu0 0
  %673 = vmatpush1.bf16.msra.mxu0 %v485
  %674 = vmatprep.subr.bf16.mxu0 0
  %675 = vmatpush1.bf16.msra.mxu0 %v486
  %676 = vmatprep.subr.bf16.mxu0 0
  %677 = vmatpush1.bf16.msra.mxu0 %v487
  %678 = vmatprep.subr.bf16.mxu0 0
  %679 = vmatpush1.bf16.msra.mxu0 %v488
  %680 = vmatprep.subr.bf16.mxu0 0
  %681 = vmatpush1.bf16.msra.mxu0 %v489
  %682 = vmatprep.subr.bf16.mxu0 0
  %683 = vmatpush1.bf16.msra.mxu0 %v490
  %684 = vmatprep.subr.bf16.mxu0 0
  %685 = vmatpush1.bf16.msra.mxu0 %v491
  %686 = vmatprep.subr.bf16.mxu0 0
  %687 = vmatpush1.bf16.msra.mxu0 %v492
  %688 = vmatprep.subr.bf16.mxu0 0
  %689 = vmatpush1.bf16.msra.mxu0 0
  %690 = vmatprep.subr.bf16.mxu0 0
  %691 = vmatpush1.bf16.msra.mxu0 0
  %692 = vmatprep.subr.bf16.mxu0 0
  %693 = vmatpush1.bf16.msra.mxu0 0
  %694 = vmatprep.subr.bf16.mxu0 0
  %695 = vmatpush1.bf16.msra.mxu0 0
  %696 = vmatprep.subr.bf16.mxu0 0
  %697 = vmatpush1.bf16.msra.mxu0 0
  %698 = vmatprep.subr.bf16.mxu0 0
  %699 = vmatpush1.bf16.msra.mxu0 0
  %700 = vmatprep.subr.bf16.mxu0 0
  %701 = vmatpush1.bf16.msra.mxu0 0
  %702 = vmatprep.subr.bf16.mxu0 0
  %703 = vmatpush1.bf16.msra.mxu0 0
  %704 = vmatprep.mubr.bf16.mxu0 0
  %705 = vmatmul.mubr.bf16.gmra.mrb[0].mxu0 %v205
  %v706 = vpop.f32.mrb[0].mxu0
  %v707 = vadd.f32 %v666, %v706
  %v708 = vpop.f32.mrb[0].mxu0
  %v709 = vpop.f32.mrb[0].mxu0
  %v710 = vadd.f32 %v669, %v709
  %v711 = vpop.f32.mrb[0].mxu0
  %712 = vdwg.mxu0
  %v713 = vmax.f32 %v707, 0.0
  %v714 = vmax.f32 %v710, 0.0
  %v715 = vpack.c.bf16 %v714, %v713
  %v716 = vld [vmem:[%s4] sm:$0xf]
  %v717 = vld [vmem:[%s4 + $0x4] sm:$0xf]
  %v718 = vld [vmem:[%s4 + $0x8] sm:$0xf]
  %v719 = vld [vmem:[%s4 + $0xc] sm:$0xf]
  %v720 = vld [vmem:[%s4 + $0x10] sm:$0xf]
  %v721 = vld [vmem:[%s4 + $0x14] sm:$0xf]
  %v722 = vld [vmem:[%s4 + $0x18] sm:$0xf]
  %v723 = vld [vmem:[%s4 + $0x1c] sm:$0xf]
  %v724 = vld [vmem:[%s4 + $0x20] sm:$0xf]
  %v725 = vld [vmem:[%s4 + $0x24] sm:$0xf]
  %v726 = vld [vmem:[%s4 + $0x28] sm:$0xf]
  %v727 = vld [vmem:[%s4 + $0x2c] sm:$0xf]
  %v728 = vld [vmem:[%s4 + $0x30] sm:$0xf]
  %v729 = vld [vmem:[%s4 + $0x34] sm:$0xf]
  %v730 = vld [vmem:[%s4 + $0x38] sm:$0xf]
  %v731 = vld [vmem:[%s4 + $0x3c] sm:$0xf]
  %v732 = vld [vmem:[%s5] sm:$0x1]
  %v734 = vlaneseq
  %v735 = vshrl.u32 %v734, 7
  %v736 = vsub.s32 0, %v735
  %v737 = vrot.slane %v732, %v736
  %v755 = vunpack.c.l.b16 %v716
  %v756 = vunpack.c.l.b16 %v717
  %v757 = vunpack.c.l.b16 %v718
  %v758 = vunpack.c.l.b16 %v719
  %v759 = vunpack.c.l.b16 %v720
  %v760 = vunpack.c.l.b16 %v721
  %v761 = vunpack.c.l.b16 %v722
  %v762 = vunpack.c.l.b16 %v723
  %v763 = vunpack.c.l.b16 %v724
  %v764 = vunpack.c.l.b16 %v725
  %v765 = vunpack.c.l.b16 %v726
  %v766 = vunpack.c.l.b16 %v727
  %v767 = vunpack.c.l.b16 %v728
  %v768 = vunpack.c.l.b16 %v729
  %v769 = vunpack.c.l.b16 %v730
  %v770 = vunpack.c.l.b16 %v731
  %v771 = vpack.c.b16 %v756, %v755
  %v772 = vpack.c.b16 %v758, %v757
  %v773 = vpack.c.b16 %v760, %v759
  %v774 = vpack.c.b16 %v762, %v761
  %v775 = vpack.c.b16 %v764, %v763
  %v776 = vpack.c.b16 %v766, %v765
  %v777 = vpack.c.b16 %v768, %v767
  %v778 = vpack.c.b16 %v770, %v769
  %787 = vmatprep.subr.bf16.mxu0 0
  %788 = vmatpush1.bf16.msra.mxu0 %v771
  %789 = vmatprep.subr.bf16.mxu0 0
  %790 = vmatpush1.bf16.msra.mxu0 %v772
  %791 = vmatprep.subr.bf16.mxu0 0
  %792 = vmatpush1.bf16.msra.mxu0 %v773
  %793 = vmatprep.subr.bf16.mxu0 0
  %794 = vmatpush1.bf16.msra.mxu0 %v774
  %795 = vmatprep.subr.bf16.mxu0 0
  %796 = vmatpush1.bf16.msra.mxu0 %v775
  %797 = vmatprep.subr.bf16.mxu0 0
  %798 = vmatpush1.bf16.msra.mxu0 %v776
  %799 = vmatprep.subr.bf16.mxu0 0
  %800 = vmatpush1.bf16.msra.mxu0 %v777
  %801 = vmatprep.subr.bf16.mxu0 0
  %802 = vmatpush1.bf16.msra.mxu0 %v778
  %803 = vmatprep.subr.bf16.mxu0 0
  %804 = vmatpush1.bf16.msra.mxu0 0
  %805 = vmatprep.subr.bf16.mxu0 0
  %806 = vmatpush1.bf16.msra.mxu0 0
  %807 = vmatprep.subr.bf16.mxu0 0
  %808 = vmatpush1.bf16.msra.mxu0 0
  %809 = vmatprep.subr.bf16.mxu0 0
  %810 = vmatpush1.bf16.msra.mxu0 0
  %811 = vmatprep.subr.bf16.mxu0 0
  %812 = vmatpush1.bf16.msra.mxu0 0
  %813 = vmatprep.subr.bf16.mxu0 0
  %814 = vmatpush1.bf16.msra.mxu0 0
  %815 = vmatprep.subr.bf16.mxu0 0
  %816 = vmatpush1.bf16.msra.mxu0 0
  %817 = vmatprep.subr.bf16.mxu0 0
  %818 = vmatpush1.bf16.msra.mxu0 0
  %819 = vmatprep.mubr.bf16.mxu0 0
  %820 = vmatmul.mubr.bf16.gmra.mrb[0].mxu0 %v715
  %v821 = vpop.f32.mrb[0].mxu0
  %v822 = vadd.f32 %v737, %v821
  %v823 = vpop.f32.mrb[0].mxu0
  %v824 = vpop.f32.mrb[0].mxu0
  %v825 = vadd.f32 %v737, %v824
  %v826 = vpop.f32.mrb[0].mxu0
  %827 = vdwg.mxu0
  %v828 = vmax.f32 %v822, 0.0
  %v829 = vmax.f32 %v825, 0.0
  %v830 = vpack.c.bf16 %v829, %v828
  %v831 = vld [vmem:[%s6] sm:$0xf]
  %v832 = vld [vmem:[%s6 + $0x4] sm:$0xf]
  %v833 = vld [vmem:[%s6 + $0x8] sm:$0xf]
  %v834 = vld [vmem:[%s6 + $0xc] sm:$0xf]
  %v835 = vld [vmem:[%s6 + $0x10] sm:$0xf]
  %v836 = vld [vmem:[%s6 + $0x14] sm:$0xf]
  %v837 = vld [vmem:[%s6 + $0x18] sm:$0xf]
  %v838 = vld [vmem:[%s6 + $0x1c] sm:$0xf]
  %v839 = vld [vmem:[%s7] sm:$0x1]
  %v841 = vlaneseq
  %v842 = vshrl.u32 %v841, 7
  %v843 = vsub.s32 0, %v842
  %v844 = vrot.slane %v839, %v843
  %v854 = vunpack.c.l.b16 %v831
  %v855 = vunpack.c.l.b16 %v832
  %v856 = vunpack.c.l.b16 %v833
  %v857 = vunpack.c.l.b16 %v834
  %v858 = vunpack.c.l.b16 %v835
  %v859 = vunpack.c.l.b16 %v836
  %v860 = vunpack.c.l.b16 %v837
  %v861 = vunpack.c.l.b16 %v838
  %v862 = vpack.c.b16 %v855, %v854
  %v863 = vpack.c.b16 %v857, %v856
  %v864 = vpack.c.b16 %v859, %v858
  %v865 = vpack.c.b16 %v861, %v860
  %vm870 = vcmask 523264
  %v872 = vsel %vm870, %v830, 0
  %874 = vmatprep.subr.bf16.mxu0 0
  %875 = vmatpush1.bf16.msra.mxu0 %v862
  %876 = vmatprep.subr.bf16.mxu0 0
  %877 = vmatpush1.bf16.msra.mxu0 %v863
  %878 = vmatprep.subr.bf16.mxu0 0
  %879 = vmatpush1.bf16.msra.mxu0 %v864
  %880 = vmatprep.subr.bf16.mxu0 0
  %881 = vmatpush1.bf16.msra.mxu0 %v865
  %882 = vmatprep.subr.bf16.mxu0 0
  %883 = vmatpush1.bf16.msra.mxu0 0
  %884 = vmatprep.subr.bf16.mxu0 0
  %885 = vmatpush1.bf16.msra.mxu0 0
  %886 = vmatprep.subr.bf16.mxu0 0
  %887 = vmatpush1.bf16.msra.mxu0 0
  %888 = vmatprep.subr.bf16.mxu0 0
  %889 = vmatpush1.bf16.msra.mxu0 0
  %890 = vmatprep.subr.bf16.mxu0 0
  %891 = vmatpush1.bf16.msra.mxu0 0
  %892 = vmatprep.subr.bf16.mxu0 0
  %893 = vmatpush1.bf16.msra.mxu0 0
  %894 = vmatprep.subr.bf16.mxu0 0
  %895 = vmatpush1.bf16.msra.mxu0 0
  %896 = vmatprep.subr.bf16.mxu0 0
  %897 = vmatpush1.bf16.msra.mxu0 0
  %898 = vmatprep.subr.bf16.mxu0 0
  %899 = vmatpush1.bf16.msra.mxu0 0
  %900 = vmatprep.subr.bf16.mxu0 0
  %901 = vmatpush1.bf16.msra.mxu0 0
  %902 = vmatprep.subr.bf16.mxu0 0
  %903 = vmatpush1.bf16.msra.mxu0 0
  %904 = vmatprep.subr.bf16.mxu0 0
  %905 = vmatpush1.bf16.msra.mxu0 0
  %906 = vmatprep.mubr.bf16.mxu0 0
  %907 = vmatmul.mubr.bf16.gmra.mrb[0].mxu0 %v872
  %v908 = vpop.f32.mrb[0].mxu0
  %v909 = vadd.f32 %v844, %v908
  %v910 = vpop.f32.mrb[0].mxu0
  %v911 = vpop.f32.mrb[0].mxu0
  %v912 = vadd.f32 %v844, %v911
  %v913 = vpop.f32.mrb[0].mxu0
  %914 = vdwg.mxu0
  %v915 = vmul.f32 %v909, 1.442695
  %v916 = vpow.pop %v915
  %v917 = vmul.f32 %v912, 1.442695
  %v918 = vpow.pop %v917
  %v919 = vld [vmem:[%s1] sm:$0xff]
  %v920 = vld [vmem:[%s1 + $0x8] sm:$0xff]
  %923 = vrot.lane.b32.xlu0 %v919, 2
  %v924 = vpop.permute.xlu0 %923
  %925 = vrot.lane.b32.xlu0 %v920, 2
  %v926 = vpop.permute.xlu0 %925
  %v929 = vmul.f32 %v916, %v924
  %v930 = vmul.f32 %v918, %v926
  %933 = vrot.lane.b32.xlu0 %v929, 126
  %v934 = vpop.permute.xlu0 %933
  %935 = vrot.lane.b32.xlu0 %v930, 126
  %v936 = vpop.permute.xlu0 %935
  %v939 = vadd.f32 %v909, %v934
  %v940 = vadd.f32 %v912, %v936
  %v941 = vld [vmem:[%s8] sm:$0x1]
  %v942 = vunpack.c.l.bf16 %v941
  %v943 = vld [vmem:[%s9] sm:$0x1]
  %945 = vset.pattern.permute.xlu0 0
  %946 = vperm.xlu0 %945, %v939
  %v947 = vpop.permute.xlu0 %946
  %950 = vset.pattern.permute.xlu0 0
  %951 = vperm.xlu0 %950, %v940
  %v952 = vpop.permute.xlu0 %951
  %v954 = vlaneseq
  %v955 = vshrl.u32 %v954, 7
  %v956 = vsub.s32 0, %v955
  %v957 = vrot.slane %v942, %v956
  %v958 = vmul.f32 %v947, %v957
  %v959 = vmul.f32 %v952, %v957
  %v961 = vlaneseq
  %v962 = vshrl.u32 %v961, 7
  %v963 = vsub.s32 0, %v962
  %v964 = vrot.slane %v943, %v963
  %v966 = vadd.f32 %v964, %v958
  %v967 = vadd.f32 %v964, %v959
  %968 = vset.pattern.permute.xlu0 1
  %969 = vperm.xlu0 %968, %v939
  %v970 = vpop.permute.xlu0 %969
  %972 = vset.pattern.permute.xlu0 1
  %973 = vperm.xlu0 %972, %v940
  %v974 = vpop.permute.xlu0 %973
  %v976 = vlaneseq
  %v977 = vshrl.u32 %v976, 7
  %v978 = vsub.s32 1, %v977
  %v979 = vrot.slane %v942, %v978
  %v980 = vmul.f32 %v970, %v979
  %v981 = vmul.f32 %v974, %v979
  %v982 = vadd.f32 %v966, %v980
  %v983 = vadd.f32 %v967, %v981
  %v984 = vmax.f32 %v982, 0.0
  %v985 = vmax.f32 %v983, 0.0
  %v986 = vpack.c.bf16 %v985, %v984
  %v987 = vld [vmem:[%s10] sm:$0xf]
  %v988 = vld [vmem:[%s10 + $0x4] sm:$0xf]
  %v989 = vld [vmem:[%s10 + $0x8] sm:$0xf]
  %v990 = vld [vmem:[%s10 + $0xc] sm:$0xf]
  %v991 = vld [vmem:[%s10 + $0x10] sm:$0xf]
  %v992 = vld [vmem:[%s10 + $0x14] sm:$0xf]
  %v993 = vld [vmem:[%s10 + $0x18] sm:$0xf]
  %v994 = vld [vmem:[%s10 + $0x1c] sm:$0xf]
  %v995 = vld [vmem:[%s11] sm:$0x1]
  %v997 = vlaneseq
  %v998 = vshrl.u32 %v997, 7
  %v999 = vsub.s32 0, %v998
  %v1000 = vrot.slane %v995, %v999
  %v1010 = vunpack.c.l.b16 %v987
  %v1011 = vunpack.c.l.b16 %v988
  %v1012 = vunpack.c.l.b16 %v989
  %v1013 = vunpack.c.l.b16 %v990
  %v1014 = vunpack.c.l.b16 %v991
  %v1015 = vunpack.c.l.b16 %v992
  %v1016 = vunpack.c.l.b16 %v993
  %v1017 = vunpack.c.l.b16 %v994
  %v1018 = vpack.c.b16 %v1011, %v1010
  %v1019 = vpack.c.b16 %v1013, %v1012
  %v1020 = vpack.c.b16 %v1015, %v1014
  %v1021 = vpack.c.b16 %v1017, %v1016
  %v1027 = vsel %vm870, %v986, 0
  %1029 = vmatprep.subr.bf16.mxu0 0
  %1030 = vmatpush1.bf16.msra.mxu0 %v1018
  %1031 = vmatprep.subr.bf16.mxu0 0
  %1032 = vmatpush1.bf16.msra.mxu0 %v1019
  %1033 = vmatprep.subr.bf16.mxu0 0
  %1034 = vmatpush1.bf16.msra.mxu0 %v1020
  %1035 = vmatprep.subr.bf16.mxu0 0
  %1036 = vmatpush1.bf16.msra.mxu0 %v1021
  %1037 = vmatprep.subr.bf16.mxu0 0
  %1038 = vmatpush1.bf16.msra.mxu0 0
  %1039 = vmatprep.subr.bf16.mxu0 0
  %1040 = vmatpush1.bf16.msra.mxu0 0
  %1041 = vmatprep.subr.bf16.mxu0 0
  %1042 = vmatpush1.bf16.msra.mxu0 0
  %1043 = vmatprep.subr.bf16.mxu0 0
  %1044 = vmatpush1.bf16.msra.mxu0 0
  %1045 = vmatprep.subr.bf16.mxu0 0
  %1046 = vmatpush1.bf16.msra.mxu0 0
  %1047 = vmatprep.subr.bf16.mxu0 0
  %1048 = vmatpush1.bf16.msra.mxu0 0
  %1049 = vmatprep.subr.bf16.mxu0 0
  %1050 = vmatpush1.bf16.msra.mxu0 0
  %1051 = vmatprep.subr.bf16.mxu0 0
  %1052 = vmatpush1.bf16.msra.mxu0 0
  %1053 = vmatprep.subr.bf16.mxu0 0
  %1054 = vmatpush1.bf16.msra.mxu0 0
  %1055 = vmatprep.subr.bf16.mxu0 0
  %1056 = vmatpush1.bf16.msra.mxu0 0
  %1057 = vmatprep.subr.bf16.mxu0 0
  %1058 = vmatpush1.bf16.msra.mxu0 0
  %1059 = vmatprep.subr.bf16.mxu0 0
  %1060 = vmatpush1.bf16.msra.mxu0 0
  %1061 = vmatprep.mubr.bf16.mxu0 0
  %1062 = vmatmul.mubr.bf16.gmra.mrb[0].mxu0 %v1027
  %v1063 = vpop.f32.mrb[0].mxu0
  %v1064 = vadd.f32 %v1000, %v1063
  %v1065 = vpop.f32.mrb[0].mxu0
  %v1066 = vpop.f32.mrb[0].mxu0
  %v1067 = vadd.f32 %v1000, %v1066
  %v1068 = vpop.f32.mrb[0].mxu0
  %1069 = vdwg.mxu0
  %v1070 = vmax.f32 %v1064, 0.0
  %v1071 = vmax.f32 %v1067, 0.0
  %v1072 = vpack.c.bf16 %v1071, %v1070
  %v1073 = vld [vmem:[%s12] sm:$0xff]
  %v1074 = vld [vmem:[%s12 + $0x8] sm:$0xff]
  %v1075 = vld [vmem:[%s12 + $0x10] sm:$0xff]
  %v1076 = vld [vmem:[%s12 + $0x18] sm:$0xf]
  %v1077 = vld [vmem:[%s12 + $0x1c] sm:$0xff]
  %v1078 = vld [vmem:[%s12 + $0x24] sm:$0xff]
  %v1079 = vld [vmem:[%s12 + $0x2c] sm:$0xff]
  %v1080 = vld [vmem:[%s12 + $0x34] sm:$0xf]
  %v1081 = vld [vmem:[%s12 + $0x38] sm:$0xff]
  %v1082 = vld [vmem:[%s12 + $0x40] sm:$0xff]
  %v1083 = vld [vmem:[%s12 + $0x48] sm:$0xff]
  %v1084 = vld [vmem:[%s12 + $0x50] sm:$0xf]
  %v1085 = vld [vmem:[%s12 + $0x54] sm:$0xff]
  %v1086 = vld [vmem:[%s12 + $0x5c] sm:$0xff]
  %v1087 = vld [vmem:[%s12 + $0x64] sm:$0xff]
  %v1088 = vld [vmem:[%s12 + $0x6c] sm:$0xf]
  %v1089 = vld [vmem:[%s12 + $0x70] sm:$0xff]
  %v1090 = vld [vmem:[%s12 + $0x78] sm:$0xff]
  %v1091 = vld [vmem:[%s12 + $0x80] sm:$0xff]
  %v1092 = vld [vmem:[%s12 + $0x88] sm:$0xf]
  %v1093 = vld [vmem:[%s12 + $0x8c] sm:$0xff]
  %v1094 = vld [vmem:[%s12 + $0x94] sm:$0xff]
  %v1095 = vld [vmem:[%s12 + $0x9c] sm:$0xff]
  %v1096 = vld [vmem:[%s12 + $0xa4] sm:$0xf]
  %v1097 = vld [vmem:[%s12 + $0xa8] sm:$0xff]
  %v1098 = vld [vmem:[%s12 + $0xb0] sm:$0xff]
  %v1099 = vld [vmem:[%s12 + $0xb8] sm:$0xff]
  %v1100 = vld [vmem:[%s12 + $0xc0] sm:$0xf]
  %v1101 = vld [vmem:[%s12 + $0xc4] sm:$0xff]
  %v1102 = vld [vmem:[%s12 + $0xcc] sm:$0xff]
  %v1103 = vld [vmem:[%s12 + $0xd4] sm:$0xff]
  %v1104 = vld [vmem:[%s12 + $0xdc] sm:$0xf]
  %v1105 = vld [vmem:[%s12 + $0xe0] sm:$0xff]
  %v1106 = vld [vmem:[%s12 + $0xe8] sm:$0xff]
  %v1107 = vld [vmem:[%s12 + $0xf0] sm:$0xff]
  %v1108 = vld [vmem:[%s12 + $0xf8] sm:$0xf]
  %v1109 = vld [vmem:[%s12 + $0xfc] sm:$0xff]
  %v1110 = vld [vmem:[%s12 + $0x104] sm:$0xff]
  %v1111 = vld [vmem:[%s12 + $0x10c] sm:$0xff]
  %v1112 = vld [vmem:[%s12 + $0x114] sm:$0xf]
  %v1113 = vld [vmem:[%s12 + $0x118] sm:$0xff]
  %v1114 = vld [vmem:[%s12 + $0x120] sm:$0xff]
  %v1115 = vld [vmem:[%s12 + $0x128] sm:$0xff]
  %v1116 = vld [vmem:[%s12 + $0x130] sm:$0xf]
  %v1117 = vld [vmem:[%s12 + $0x134] sm:$0xff]
  %v1118 = vld [vmem:[%s12 + $0x13c] sm:$0xff]
  %v1119 = vld [vmem:[%s12 + $0x144] sm:$0xff]
  %v1120 = vld [vmem:[%s12 + $0x14c] sm:$0xf]
  %v1121 = vld [vmem:[%s12 + $0x150] sm:$0xff]
  %v1122 = vld [vmem:[%s12 + $0x158] sm:$0xff]
  %v1123 = vld [vmem:[%s12 + $0x160] sm:$0xff]
  %v1124 = vld [vmem:[%s12 + $0x168] sm:$0xf]
  %v1125 = vld [vmem:[%s12 + $0x16c] sm:$0xff]
  %v1126 = vld [vmem:[%s12 + $0x174] sm:$0xff]
  %v1127 = vld [vmem:[%s12 + $0x17c] sm:$0xff]
  %v1128 = vld [vmem:[%s12 + $0x184] sm:$0xf]
  %v1129 = vld [vmem:[%s12 + $0x188] sm:$0xff]
  %v1130 = vld [vmem:[%s12 + $0x190] sm:$0xff]
  %v1131 = vld [vmem:[%s12 + $0x198] sm:$0xff]
  %v1132 = vld [vmem:[%s12 + $0x1a0] sm:$0xf]
  %v1133 = vld [vmem:[%s12 + $0x1a4] sm:$0xff]
  %v1134 = vld [vmem:[%s12 + $0x1ac] sm:$0xff]
  %v1135 = vld [vmem:[%s12 + $0x1b4] sm:$0xff]
  %v1136 = vld [vmem:[%s12 + $0x1bc] sm:$0xf]
  %v1137 = vld [vmem:[%s13] sm:$0xff]
  %v1139 = vlaneseq
  %v1140 = vshrl.u32 %v1139, 7
  %v1141 = vsub.s32 0, %v1140
  %v1142 = vrot.slane %v1137, %v1141
  %v1143 = vlaneseq
  %v1144 = vshrl.u32 %v1143, 7
  %v1145 = vsub.s32 1, %v1144
  %v1146 = vrot.slane %v1137, %v1145
  %v1147 = vlaneseq
  %v1148 = vshrl.u32 %v1147, 7
  %v1149 = vsub.s32 2, %v1148
  %v1150 = vrot.slane %v1137, %v1149
  %v1151 = vlaneseq
  %v1152 = vshrl.u32 %v1151, 7
  %v1153 = vsub.s32 3, %v1152
  %v1154 = vrot.slane %v1137, %v1153
  %v1155 = vlaneseq
  %v1156 = vshrl.u32 %v1155, 7
  %v1157 = vsub.s32 4, %v1156
  %v1158 = vrot.slane %v1137, %v1157
  %v1159 = vlaneseq
  %v1160 = vshrl.u32 %v1159, 7
  %v1161 = vsub.s32 5, %v1160
  %v1162 = vrot.slane %v1137, %v1161
  %v1163 = vlaneseq
  %v1164 = vshrl.u32 %v1163, 7
  %v1165 = vsub.s32 6, %v1164
  %v1166 = vrot.slane %v1137, %v1165
  %v1238 = vunpack.c.l.b16 %v1073
  %v1239 = vunpack.c.h.b16 %v1073
  %v1240 = vunpack.c.l.b16 %v1074
  %v1241 = vunpack.c.h.b16 %v1074
  %v1242 = vunpack.c.l.b16 %v1075
  %v1243 = vunpack.c.h.b16 %v1075
  %v1244 = vunpack.c.l.b16 %v1076
  %v1245 = vunpack.c.l.b16 %v1077
  %v1246 = vunpack.c.h.b16 %v1077
  %v1247 = vunpack.c.l.b16 %v1078
  %v1248 = vunpack.c.h.b16 %v1078
  %v1249 = vunpack.c.l.b16 %v1079
  %v1250 = vunpack.c.h.b16 %v1079
  %v1251 = vunpack.c.l.b16 %v1080
  %v1252 = vunpack.c.l.b16 %v1081
  %v1253 = vunpack.c.h.b16 %v1081
  %v1254 = vunpack.c.l.b16 %v1082
  %v1255 = vunpack.c.h.b16 %v1082
  %v1256 = vunpack.c.l.b16 %v1083
  %v1257 = vunpack.c.h.b16 %v1083
  %v1258 = vunpack.c.l.b16 %v1084
  %v1259 = vunpack.c.l.b16 %v1085
  %v1260 = vunpack.c.h.b16 %v1085
  %v1261 = vunpack.c.l.b16 %v1086
  %v1262 = vunpack.c.h.b16 %v1086
  %v1263 = vunpack.c.l.b16 %v1087
  %v1264 = vunpack.c.h.b16 %v1087
  %v1265 = vunpack.c.l.b16 %v1088
  %v1266 = vunpack.c.l.b16 %v1089
  %v1267 = vunpack.c.h.b16 %v1089
  %v1268 = vunpack.c.l.b16 %v1090
  %v1269 = vunpack.c.h.b16 %v1090
  %v1270 = vunpack.c.l.b16 %v1091
  %v1271 = vunpack.c.h.b16 %v1091
  %v1272 = vunpack.c.l.b16 %v1092
  %v1273 = vunpack.c.l.b16 %v1093
  %v1274 = vunpack.c.h.b16 %v1093
  %v1275 = vunpack.c.l.b16 %v1094
  %v1276 = vunpack.c.h.b16 %v1094
  %v1277 = vunpack.c.l.b16 %v1095
  %v1278 = vunpack.c.h.b16 %v1095
  %v1279 = vunpack.c.l.b16 %v1096
  %v1280 = vunpack.c.l.b16 %v1097
  %v1281 = vunpack.c.h.b16 %v1097
  %v1282 = vunpack.c.l.b16 %v1098
  %v1283 = vunpack.c.h.b16 %v1098
  %v1284 = vunpack.c.l.b16 %v1099
  %v1285 = vunpack.c.h.b16 %v1099
  %v1286 = vunpack.c.l.b16 %v1100
  %v1287 = vunpack.c.l.b16 %v1101
  %v1288 = vunpack.c.h.b16 %v1101
  %v1289 = vunpack.c.l.b16 %v1102
  %v1290 = vunpack.c.h.b16 %v1102
  %v1291 = vunpack.c.l.b16 %v1103
  %v1292 = vunpack.c.h.b16 %v1103
  %v1293 = vunpack.c.l.b16 %v1104
  %v1294 = vunpack.c.l.b16 %v1105
  %v1295 = vunpack.c.h.b16 %v1105
  %v1296 = vunpack.c.l.b16 %v1106
  %v1297 = vunpack.c.h.b16 %v1106
  %v1298 = vunpack.c.l.b16 %v1107
  %v1299 = vunpack.c.h.b16 %v1107
  %v1300 = vunpack.c.l.b16 %v1108
  %v1301 = vunpack.c.l.b16 %v1109
  %v1302 = vunpack.c.h.b16 %v1109
  %v1303 = vunpack.c.l.b16 %v1110
  %v1304 = vunpack.c.h.b16 %v1110
  %v1305 = vunpack.c.l.b16 %v1111
  %v1306 = vunpack.c.h.b16 %v1111
  %v1307 = vunpack.c.l.b16 %v1112
  %v1308 = vunpack.c.l.b16 %v1113
  %v1309 = vunpack.c.h.b16 %v1113
  %v1310 = vunpack.c.l.b16 %v1114
  %v1311 = vunpack.c.h.b16 %v1114
  %v1312 = vunpack.c.l.b16 %v1115
  %v1313 = vunpack.c.h.b16 %v1115
  %v1314 = vunpack.c.l.b16 %v1116
  %v1315 = vunpack.c.l.b16 %v1117
  %v1316 = vunpack.c.h.b16 %v1117
  %v1317 = vunpack.c.l.b16 %v1118
  %v1318 = vunpack.c.h.b16 %v1118
  %v1319 = vunpack.c.l.b16 %v1119
  %v1320 = vunpack.c.h.b16 %v1119
  %v1321 = vunpack.c.l.b16 %v1120
  %v1322 = vunpack.c.l.b16 %v1121
  %v1323 = vunpack.c.h.b16 %v1121
  %v1324 = vunpack.c.l.b16 %v1122
  %v1325 = vunpack.c.h.b16 %v1122
  %v1326 = vunpack.c.l.b16 %v1123
  %v1327 = vunpack.c.h.b16 %v1123
  %v1328 = vunpack.c.l.b16 %v1124
  %v1329 = vunpack.c.l.b16 %v1125
  %v1330 = vunpack.c.h.b16 %v1125
  %v1331 = vunpack.c.l.b16 %v1126
  %v1332 = vunpack.c.h.b16 %v1126
  %v1333 = vunpack.c.l.b16 %v1127
  %v1334 = vunpack.c.h.b16 %v1127
  %v1335 = vunpack.c.l.b16 %v1128
  %v1336 = vunpack.c.l.b16 %v1129
  %v1337 = vunpack.c.h.b16 %v1129
  %v1338 = vunpack.c.l.b16 %v1130
  %v1339 = vunpack.c.h.b16 %v1130
  %v1340 = vunpack.c.l.b16 %v1131
  %v1341 = vunpack.c.h.b16 %v1131
  %v1342 = vunpack.c.l.b16 %v1132
  %v1343 = vunpack.c.l.b16 %v1133
  %v1344 = vunpack.c.h.b16 %v1133
  %v1345 = vunpack.c.l.b16 %v1134
  %v1346 = vunpack.c.h.b16 %v1134
  %v1347 = vunpack.c.l.b16 %v1135
  %v1348 = vunpack.c.h.b16 %v1135
  %v1349 = vunpack.c.l.b16 %v1136
  %v1350 = vpack.c.b16 %v1245, %v1238
  %v1351 = vpack.c.b16 %v1246, %v1239
  %v1352 = vpack.c.b16 %v1247, %v1240
  %v1353 = vpack.c.b16 %v1248, %v1241
  %v1354 = vpack.c.b16 %v1249, %v1242
  %v1355 = vpack.c.b16 %v1250, %v1243
  %v1356 = vpack.c.b16 %v1251, %v1244
  %v1357 = vpack.c.b16 %v1259, %v1252
  %v1358 = vpack.c.b16 %v1260, %v1253
  %v1359 = vpack.c.b16 %v1261, %v1254
  %v1360 = vpack.c.b16 %v1262, %v1255
  %v1361 = vpack.c.b16 %v1263, %v1256
  %v1362 = vpack.c.b16 %v1264, %v1257
  %v1363 = vpack.c.b16 %v1265, %v1258
  %v1364 = vpack.c.b16 %v1273, %v1266
  %v1365 = vpack.c.b16 %v1274, %v1267
  %v1366 = vpack.c.b16 %v1275, %v1268
  %v1367 = vpack.c.b16 %v1276, %v1269
  %v1368 = vpack.c.b16 %v1277, %v1270
  %v1369 = vpack.c.b16 %v1278, %v1271
  %v1370 = vpack.c.b16 %v1279, %v1272
  %v1371 = vpack.c.b16 %v1287, %v1280
  %v1372 = vpack.c.b16 %v1288, %v1281
  %v1373 = vpack.c.b16 %v1289, %v1282
  %v1374 = vpack.c.b16 %v1290, %v1283
  %v1375 = vpack.c.b16 %v1291, %v1284
  %v1376 = vpack.c.b16 %v1292, %v1285
  %v1377 = vpack.c.b16 %v1293, %v1286
  %v1378 = vpack.c.b16 %v1301, %v1294
  %v1379 = vpack.c.b16 %v1302, %v1295
  %v1380 = vpack.c.b16 %v1303, %v1296
  %v1381 = vpack.c.b16 %v1304, %v1297
  %v1382 = vpack.c.b16 %v1305, %v1298
  %v1383 = vpack.c.b16 %v1306, %v1299
  %v1384 = vpack.c.b16 %v1307, %v1300
  %v1385 = vpack.c.b16 %v1315, %v1308
  %v1386 = vpack.c.b16 %v1316, %v1309
  %v1387 = vpack.c.b16 %v1317, %v1310
  %v1388 = vpack.c.b16 %v1318, %v1311
  %v1389 = vpack.c.b16 %v1319, %v1312
  %v1390 = vpack.c.b16 %v1320, %v1313
  %v1391 = vpack.c.b16 %v1321, %v1314
  %v1392 = vpack.c.b16 %v1329, %v1322
  %v1393 = vpack.c.b16 %v1330, %v1323
  %v1394 = vpack.c.b16 %v1331, %v1324
  %v1395 = vpack.c.b16 %v1332, %v1325
  %v1396 = vpack.c.b16 %v1333, %v1326
  %v1397 = vpack.c.b16 %v1334, %v1327
  %v1398 = vpack.c.b16 %v1335, %v1328
  %v1399 = vpack.c.b16 %v1343, %v1336
  %v1400 = vpack.c.b16 %v1344, %v1337
  %v1401 = vpack.c.b16 %v1345, %v1338
  %v1402 = vpack.c.b16 %v1346, %v1339
  %v1403 = vpack.c.b16 %v1347, %v1340
  %v1404 = vpack.c.b16 %v1348, %v1341
  %v1405 = vpack.c.b16 %v1349, %v1342
  %1462 = vmatprep.subr.bf16.mxu0 %v1351
  %1463 = vmatpush1.bf16.msra.mxu0 %v1350
  %1464 = vmatprep.subr.bf16.mxu0 %v1358
  %1465 = vmatpush1.bf16.msra.mxu0 %v1357
  %1466 = vmatprep.subr.bf16.mxu0 %v1365
  %1467 = vmatpush1.bf16.msra.mxu0 %v1364
  %1468 = vmatprep.subr.bf16.mxu0 %v1372
  %1469 = vmatpush1.bf16.msra.mxu0 %v1371
  %1470 = vmatprep.subr.bf16.mxu0 %v1379
  %1471 = vmatpush1.bf16.msra.mxu0 %v1378
  %1472 = vmatprep.subr.bf16.mxu0 %v1386
  %1473 = vmatpush1.bf16.msra.mxu0 %v1385
  %1474 = vmatprep.subr.bf16.mxu0 %v1393
  %1475 = vmatpush1.bf16.msra.mxu0 %v1392
  %1476 = vmatprep.subr.bf16.mxu0 %v1400
  %1477 = vmatpush1.bf16.msra.mxu0 %v1399
  %1478 = vmatprep.subr.bf16.mxu0 0
  %1479 = vmatpush1.bf16.msra.mxu0 0
  %1480 = vmatprep.subr.bf16.mxu0 0
  %1481 = vmatpush1.bf16.msra.mxu0 0
  %1482 = vmatprep.subr.bf16.mxu0 0
  %1483 = vmatpush1.bf16.msra.mxu0 0
  %1484 = vmatprep.subr.bf16.mxu0 0
  %1485 = vmatpush1.bf16.msra.mxu0 0
  %1486 = vmatprep.subr.bf16.mxu0 0
  %1487 = vmatpush1.bf16.msra.mxu0 0
  %1488 = vmatprep.subr.bf16.mxu0 0
  %1489 = vmatpush1.bf16.msra.mxu0 0
  %1490 = vmatprep.subr.bf16.mxu0 0
  %1491 = vmatpush1.bf16.msra.mxu0 0
  %1492 = vmatprep.subr.bf16.mxu0 0
  %1493 = vmatpush1.bf16.msra.mxu0 0
  %1494 = vmatprep.mubr.bf16.mxu0 0
  %1495 = vmatmul.mubr.bf16.gmra.mrb[0].mxu0 %v1072
  %v1496 = vpop.f32.mrb[0].mxu0
  %v1497 = vadd.f32 %v1142, %v1496
  %v1498 = vpop.f32.mrb[0].mxu0
  %v1499 = vadd.f32 %v1146, %v1498
  %v1500 = vpop.f32.mrb[0].mxu0
  %v1501 = vadd.f32 %v1142, %v1500
  %v1502 = vpop.f32.mrb[0].mxu0
  %v1503 = vadd.f32 %v1146, %v1502
  %1504 = vdwg.mxu0
  %1505 = vmatprep.subr.bf16.mxu0 %v1353
  %1506 = vmatpush1.bf16.msra.mxu0 %v1352
  %1507 = vmatprep.subr.bf16.mxu0 %v1360
  %1508 = vmatpush1.bf16.msra.mxu0 %v1359
  %1509 = vmatprep.subr.bf16.mxu0 %v1367
  %1510 = vmatpush1.bf16.msra.mxu0 %v1366
  %1511 = vmatprep.subr.bf16.mxu0 %v1374
  %1512 = vmatpush1.bf16.msra.mxu0 %v1373
  %1513 = vmatprep.subr.bf16.mxu0 %v1381
  %1514 = vmatpush1.bf16.msra.mxu0 %v1380
  %1515 = vmatprep.subr.bf16.mxu0 %v1388
  %1516 = vmatpush1.bf16.msra.mxu0 %v1387
  %1517 = vmatprep.subr.bf16.mxu0 %v1395
  %1518 = vmatpush1.bf16.msra.mxu0 %v1394
  %1519 = vmatprep.subr.bf16.mxu0 %v1402
  %1520 = vmatpush1.bf16.msra.mxu0 %v1401
  %1521 = vmatprep.subr.bf16.mxu0 0
  %1522 = vmatpush1.bf16.msra.mxu0 0
  %1523 = vmatprep.subr.bf16.mxu0 0
  %1524 = vmatpush1.bf16.msra.mxu0 0
  %1525 = vmatprep.subr.bf16.mxu0 0
  %1526 = vmatpush1.bf16.msra.mxu0 0
  %1527 = vmatprep.subr.bf16.mxu0 0
  %1528 = vmatpush1.bf16.msra.mxu0 0
  %1529 = vmatprep.subr.bf16.mxu0 0
  %1530 = vmatpush1.bf16.msra.mxu0 0
  %1531 = vmatprep.subr.bf16.mxu0 0
  %1532 = vmatpush1.bf16.msra.mxu0 0
  %1533 = vmatprep.subr.bf16.mxu0 0
  %1534 = vmatpush1.bf16.msra.mxu0 0
  %1535 = vmatprep.subr.bf16.mxu0 0
  %1536 = vmatpush1.bf16.msra.mxu0 0
  %1537 = vmatprep.mubr.bf16.mxu0 0
  %1538 = vmatmul.mubr.bf16.gmra.mrb[0].mxu0 %v1072
  %v1539 = vpop.f32.mrb[0].mxu0
  %v1540 = vadd.f32 %v1150, %v1539
  %v1541 = vpop.f32.mrb[0].mxu0
  %v1542 = vadd.f32 %v1154, %v1541
  %v1543 = vpop.f32.mrb[0].mxu0
  %v1544 = vadd.f32 %v1150, %v1543
  %v1545 = vpop.f32.mrb[0].mxu0
  %v1546 = vadd.f32 %v1154, %v1545
  %1547 = vdwg.mxu0
  %1548 = vmatprep.subr.bf16.mxu0 %v1355
  %1549 = vmatpush1.bf16.msra.mxu0 %v1354
  %1550 = vmatprep.subr.bf16.mxu0 %v1362
  %1551 = vmatpush1.bf16.msra.mxu0 %v1361
  %1552 = vmatprep.subr.bf16.mxu0 %v1369
  %1553 = vmatpush1.bf16.msra.mxu0 %v1368
  %1554 = vmatprep.subr.bf16.mxu0 %v1376
  %1555 = vmatpush1.bf16.msra.mxu0 %v1375
  %1556 = vmatprep.subr.bf16.mxu0 %v1383
  %1557 = vmatpush1.bf16.msra.mxu0 %v1382
  %1558 = vmatprep.subr.bf16.mxu0 %v1390
  %1559 = vmatpush1.bf16.msra.mxu0 %v1389
  %1560 = vmatprep.subr.bf16.mxu0 %v1397
  %1561 = vmatpush1.bf16.msra.mxu0 %v1396
  %1562 = vmatprep.subr.bf16.mxu0 %v1404
  %1563 = vmatpush1.bf16.msra.mxu0 %v1403
  %1564 = vmatprep.subr.bf16.mxu0 0
  %1565 = vmatpush1.bf16.msra.mxu0 0
  %1566 = vmatprep.subr.bf16.mxu0 0
  %1567 = vmatpush1.bf16.msra.mxu0 0
  %1568 = vmatprep.subr.bf16.mxu0 0
  %1569 = vmatpush1.bf16.msra.mxu0 0
  %1570 = vmatprep.subr.bf16.mxu0 0
  %1571 = vmatpush1.bf16.msra.mxu0 0
  %1572 = vmatprep.subr.bf16.mxu0 0
  %1573 = vmatpush1.bf16.msra.mxu0 0
  %1574 = vmatprep.subr.bf16.mxu0 0
  %1575 = vmatpush1.bf16.msra.mxu0 0
  %1576 = vmatprep.subr.bf16.mxu0 0
  %1577 = vmatpush1.bf16.msra.mxu0 0
  %1578 = vmatprep.subr.bf16.mxu0 0
  %1579 = vmatpush1.bf16.msra.mxu0 0
  %1580 = vmatprep.mubr.bf16.mxu0 0
  %1581 = vmatmul.mubr.bf16.gmra.mrb[0].mxu0 %v1072
  %v1582 = vpop.f32.mrb[0].mxu0
  %v1583 = vadd.f32 %v1158, %v1582
  %v1584 = vpop.f32.mrb[0].mxu0
  %v1585 = vadd.f32 %v1162, %v1584
  %v1586 = vpop.f32.mrb[0].mxu0
  %v1587 = vadd.f32 %v1158, %v1586
  %v1588 = vpop.f32.mrb[0].mxu0
  %v1589 = vadd.f32 %v1162, %v1588
  %1590 = vdwg.mxu0
  %1591 = vmatprep.subr.bf16.mxu0 0
  %1592 = vmatpush1.bf16.msra.mxu0 %v1356
  %1593 = vmatprep.subr.bf16.mxu0 0
  %1594 = vmatpush1.bf16.msra.mxu0 %v1363
  %1595 = vmatprep.subr.bf16.mxu0 0
  %1596 = vmatpush1.bf16.msra.mxu0 %v1370
  %1597 = vmatprep.subr.bf16.mxu0 0
  %1598 = vmatpush1.bf16.msra.mxu0 %v1377
  %1599 = vmatprep.subr.bf16.mxu0 0
  %1600 = vmatpush1.bf16.msra.mxu0 %v1384
  %1601 = vmatprep.subr.bf16.mxu0 0
  %1602 = vmatpush1.bf16.msra.mxu0 %v1391
  %1603 = vmatprep.subr.bf16.mxu0 0
  %1604 = vmatpush1.bf16.msra.mxu0 %v1398
  %1605 = vmatprep.subr.bf16.mxu0 0
  %1606 = vmatpush1.bf16.msra.mxu0 %v1405
  %1607 = vmatprep.subr.bf16.mxu0 0
  %1608 = vmatpush1.bf16.msra.mxu0 0
  %1609 = vmatprep.subr.bf16.mxu0 0
  %1610 = vmatpush1.bf16.msra.mxu0 0
  %1611 = vmatprep.subr.bf16.mxu0 0
  %1612 = vmatpush1.bf16.msra.mxu0 0
  %1613 = vmatprep.subr.bf16.mxu0 0
  %1614 = vmatpush1.bf16.msra.mxu0 0
  %1615 = vmatprep.subr.bf16.mxu0 0
  %1616 = vmatpush1.bf16.msra.mxu0 0
  %1617 = vmatprep.subr.bf16.mxu0 0
  %1618 = vmatpush1.bf16.msra.mxu0 0
  %1619 = vmatprep.subr.bf16.mxu0 0
  %1620 = vmatpush1.bf16.msra.mxu0 0
  %1621 = vmatprep.subr.bf16.mxu0 0
  %1622 = vmatpush1.bf16.msra.mxu0 0
  %1623 = vmatprep.mubr.bf16.mxu0 0
  %1624 = vmatmul.mubr.bf16.gmra.mrb[0].mxu0 %v1072
  %v1625 = vpop.f32.mrb[0].mxu0
  %v1626 = vadd.f32 %v1166, %v1625
  %v1627 = vpop.f32.mrb[0].mxu0
  %v1628 = vpop.f32.mrb[0].mxu0
  %v1629 = vadd.f32 %v1166, %v1628
  %v1630 = vpop.f32.mrb[0].mxu0
  %1631 = vdwg.mxu0
  %1632 = vst [vmem:[%s14] sm:$0xff] %v1497
  %1633 = vst [vmem:[%s14 + $0x8] sm:$0xff] %v1499
  %1634 = vst [vmem:[%s14 + $0x10] sm:$0xff] %v1540
  %1635 = vst [vmem:[%s14 + $0x18] sm:$0xff] %v1542
  %1636 = vst [vmem:[%s14 + $0x20] sm:$0xff] %v1583
  %1637 = vst [vmem:[%s14 + $0x28] sm:$0xff] %v1585
  %1638 = vst [vmem:[%s14 + $0x30] sm:$0xff] %v1626
  %1639 = vst [vmem:[%s14 + $0x38] sm:$0xff] %v1501
  %1640 = vst [vmem:[%s14 + $0x40] sm:$0xff] %v1503
  %1641 = vst [vmem:[%s14 + $0x48] sm:$0xff] %v1544
  %1642 = vst [vmem:[%s14 + $0x50] sm:$0xff] %v1546
  %1643 = vst [vmem:[%s14 + $0x58] sm:$0xff] %v1587
  %1644 = vst [vmem:[%s14 + $0x60] sm:$0xff] %v1589
  %1645 = vst [vmem:[%s14 + $0x68] sm:$0xff] %v1629
  %1646 = vrot.lane.b32.xlu0 %v939, 4
  %v1647 = vpop.permute.xlu0 %1646
  %1648 = vrot.lane.b32.xlu0 %v940, 4
  %v1649 = vpop.permute.xlu0 %1648
  %vm1652 = vcmask 15360
  %v1653 = vsel %vm1652, %v909, %v916
  %v1654 = vsel %vm1652, %v912, %v918
  %vm1655 = vcmask 31744
  %v1656 = vsel %vm1655, %v1653, %v1647
  %v1657 = vsel %vm1655, %v1654, %v1649
  %vm1658 = vcmask 48128
  %v1659 = vsel %vm1658, %v1656, 0.0
  %v1660 = vsel %vm1658, %v1657, 0.0
  %1661 = vst [vmem:[%s15] sm:$0xff] %v1659
  %1662 = vst [vmem:[%s15 + $0x8] sm:$0xff] %v1660
  // Predicated region
  $region58: #{vae_forward.1} parent=0 // pred_check
    _
  $region59: #{vae_forward.1} parent=0 // pred_check_branch
    %1664 = sbr.rel (0) target = $region61
  $region60: #{vae_forward.1} parent=0 // pred_region
    _
  $region61: #{vae_forward.1} parent=0 // pred_fallthru
    _
  // Predicated region
  $region62: #{vae_forward.1} parent=0 // pred_check
    _
  $region63: #{vae_forward.1} parent=0 // pred_check_branch
    %1666 = sbr.rel (0) target = $region65
  $region64: #{vae_forward.1} parent=0 // pred_region
    _
  $region65: #{vae_forward.1} parent=0 // pred_fallthru
    _
  // Predicated region
  $region66: #{vae_forward.1} parent=0 // pred_check
    _
  $region67: #{vae_forward.1} parent=0 // pred_check_branch
    %1668 = sbr.rel (0) target = $region69
  $region68: #{vae_forward.1} parent=0 // pred_region
    _
  $region69: #{vae_forward.1} parent=0 // pred_fallthru
    _
  // Predicated region
  $region70: #{vae_forward.1} parent=0 // pred_check
    _
  $region71: #{vae_forward.1} parent=0 // pred_check_branch
    %1670 = sbr.rel (0) target = $region73
  $region72: #{vae_forward.1} parent=0 // pred_region
    _
  $region73: #{vae_forward.1} parent=0 // pred_fallthru
    _

</llo_original>
